<compile_context>
chip_gen: v6e
topology: v6e:2x2x1
jax: 0.10.0
libtpu: 0.0.40
codegen_flags: <defaults>
</compile_context>

<pallas_src>
import functools

import jax
import jax.numpy as jnp
from jax.experimental import pallas as pl
from jax.experimental.pallas import tpu as pltpu

OUT_PAD = 128  # lane-dense padded output width


def _gnn_kernel(xg_ref, xs_ref, agg_ref, ahist_ref, ain_ref, ass_ref,
                w1_ref, w3_ref, w4_ref, w2_ref, wlin_ref, bias_ref, out_ref):
    f32 = jnp.float32
    bf16 = jnp.bfloat16
    dot = functools.partial(jnp.dot, preferred_element_type=f32)
    H = w1_ref.shape[1]

    # ---- conv1: TAGConv(5, H, K=2). a_gg is pre-normalized (D^-1/2 A D^-1/2),
    #      so each hop is a plain matmul; the 3 per-hop projections are fused into
    #      one [h0|h1|h2] @ [w10;w11;w12] matmul. ----
    Ag = agg_ref[...]
    h0 = xg_ref[...]
    h1 = dot(Ag, h0).astype(bf16)
    h2 = dot(Ag, h1).astype(bf16)
    game = dot(jnp.concatenate([h0, h1, h2], axis=-1), w1_ref[...]) + bias_ref[0:1, :H]
    game = jnp.maximum(game, 0.0).astype(bf16)            # .relu()

    # ---- conv3: GraphConv((-1,-1), H); a_hist already carries the edge_attr
    #      weights, fused [agg | xs] @ [wrel; wroot]. ----
    agg = dot(ahist_ref[...], game).astype(bf16)
    state = dot(jnp.concatenate([agg, xs_ref[...]], axis=-1), w3_ref[...]) + bias_ref[1:2, :H]
    state = jnp.maximum(state, 0.0).astype(bf16)          # .relu()

    # ---- conv4: SAGEConv((-1,-1), H); a_in pre-normalized to the row-mean
    #      operator, fused [agg | state] @ [wl; wr]. ----
    agg = dot(ain_ref[...], game).astype(bf16)
    state = dot(jnp.concatenate([agg, state], axis=-1), w4_ref[...]) + bias_ref[2:3, :H]
    state = jnp.maximum(state, 0.0).astype(bf16)          # .relu()

    # ---- conv2: TAGConv(H, H, K=3); a_ss pre-normalized, single 4H (=128 lane)
    #      contraction [s0|s1|s2|s3] @ [w20;w21;w22;w23]. ----
    As = ass_ref[...]
    s0 = state
    s1 = dot(As, s0).astype(bf16)
    s2 = dot(As, s1).astype(bf16)
    s3 = dot(As, s2).astype(bf16)
    state = dot(jnp.concatenate([s0, s1, s2, s3], axis=-1), w2_ref[...]) + bias_ref[3:4, :H]
    state = jnp.maximum(state, 0.0).astype(bf16)          # .relu()

    # ---- lin: Linear(H, O), output padded to 128 lanes (unmasked vst), sliced
    #      back to O in the wrapper. ----
    out_ref[...] = dot(state, wlin_ref[...]) + bias_ref[4:5, :]


def run_model(xg, xs, a_gg, a_hist, a_in, a_ss, p):
    """Batched wrapper: G graphs -> grid=(G,), 'parallel' axis; all normalization
    and weight packing happens host-side so the kernel is matmul-only."""
    G, NG, FG = xg.shape
    _, NS, FS = xs.shape
    H = p["w10"].shape[1]
    O = p["wlin"].shape[1]
    bf16 = jnp.bfloat16

    def sym_norm(A):                                  # D^-1/2 A D^-1/2 (gcn_norm, no self-loops)
        deg = A.sum(-1, keepdims=True)
        dinv = jnp.where(deg > 0, jax.lax.rsqrt(jnp.where(deg > 0, deg, 1.0)), 0.0)
        return dinv * A * jnp.swapaxes(dinv, -1, -2)

    def mean_norm(A):                                 # row-mean operator (SAGE mean aggr)
        cnt = A.sum(-1, keepdims=True)
        return jnp.where(cnt > 0, A / jnp.where(cnt > 0, cnt, 1.0), 0.0)

    agg_n = sym_norm(a_gg).astype(bf16)
    ass_n = sym_norm(a_ss).astype(bf16)
    ain_n = mean_norm(a_in).astype(bf16)
    ahist = a_hist.astype(bf16)
    xg_b = xg.astype(bf16)
    xs_b = xs.astype(bf16)

    # fused / lane-padded weight slabs (host-side packing)
    w1 = jnp.concatenate([p["w10"], p["w11"], p["w12"]], axis=0).astype(bf16)            # (3*FG, H)
    w3 = jnp.concatenate([p["wrel"], p["wroot"]], axis=0).astype(bf16)                   # (H+FS, H)
    w4 = jnp.concatenate([p["wl"], p["wr"]], axis=0).astype(bf16)                        # (2H, H)
    w2 = jnp.concatenate([p["w20"], p["w21"], p["w22"], p["w23"]], axis=0).astype(bf16)  # (4H, H)
    wlin = jnp.zeros((H, OUT_PAD), jnp.float32).at[:, :O].set(p["wlin"]).astype(bf16)    # (H, 128)

    bias = jnp.zeros((8, OUT_PAD), jnp.float32)       # all biases in one slab (f32)
    bias = bias.at[0, :H].set(p["b1"][0])
    bias = bias.at[1, :H].set(p["brel"][0])
    bias = bias.at[2, :H].set(p["bl"][0])
    bias = bias.at[3, :H].set(p["b2"][0])
    bias = bias.at[4, :O].set(p["blin"][0])

    per_graph = lambda a: pl.BlockSpec((None,) + a.shape[1:], lambda g: (g, 0, 0))
    shared = lambda a: pl.BlockSpec(a.shape, lambda g: (0, 0))

    out = pl.pallas_call(
        _gnn_kernel,
        out_shape=jax.ShapeDtypeStruct((G, NS, OUT_PAD), jnp.float32),
        grid=(G,),
        in_specs=[per_graph(xg_b), per_graph(xs_b),
                  per_graph(agg_n), per_graph(ahist),
                  per_graph(ain_n), per_graph(ass_n),
                  shared(w1), shared(w3), shared(w4), shared(w2),
                  shared(wlin), shared(bias)],
        out_specs=pl.BlockSpec((None, NS, OUT_PAD), lambda g: (g, 0, 0)),
        compiler_params=pltpu.CompilerParams(dimension_semantics=("parallel",)),
    )(xg_b, xs_b, agg_n, ahist, ain_n, ass_n, w1, w3, w4, w2, wlin, bias)
    return out[:, :, :O]


# -------------------- glue: params, dense adjacency, pure-f32 reference --------------------

def init_params(key, hidden, out_ch, game_feat, state_feat):
    ks = jax.random.split(key, 17)
    w = lambda k, shape: jax.random.normal(k, shape, jnp.float32) * 0.1
    return dict(
        w10=w(ks[0], (game_feat, hidden)), w11=w(ks[1], (game_feat, hidden)),
        w12=w(ks[2], (game_feat, hidden)), b1=w(ks[3], (1, hidden)),
        wrel=w(ks[4], (hidden, hidden)), brel=w(ks[5], (1, hidden)),
        wroot=w(ks[6], (state_feat, hidden)),
        wl=w(ks[7], (hidden, hidden)), bl=w(ks[8], (1, hidden)),
        wr=w(ks[9], (hidden, hidden)),
        w20=w(ks[10], (hidden, hidden)), w21=w(ks[11], (hidden, hidden)),
        w22=w(ks[12], (hidden, hidden)), w23=w(ks[13], (hidden, hidden)),
        b2=w(ks[14], (1, hidden)),
        wlin=w(ks[15], (hidden, out_ch)), blin=w(ks[16], (1, out_ch)),
    )


def dense_adj(src, dst, n_src, n_dst, weights=None):
    """A[i, j] = (sum of) edge weight(s) of edge j -> i (scatter-add, PyG semantics)."""
    w = jnp.ones(src.shape, jnp.float32) if weights is None else weights.astype(jnp.float32)
    return jnp.zeros((n_dst, n_src), jnp.float32).at[dst, src].add(w)


def reference(xg, xs, a_gg, a_hist, a_in, a_ss, p):
    """Pure-f32, un-fused mirror of the module semantics (single graph)."""
    def sym_prop(A):
        deg = A.sum(1, keepdims=True)
        dinv = jnp.where(deg > 0, jax.lax.rsqrt(jnp.where(deg > 0, deg, 1.0)), 0.0)
        return lambda h: dinv * (A @ (dinv * h))
    pg = sym_prop(a_gg)
    h0 = xg; h1 = pg(h0); h2 = pg(h1)
    game = jax.nn.relu(h0 @ p["w10"] + h1 @ p["w11"] + h2 @ p["w12"] + p["b1"])
    state = jax.nn.relu((a_hist @ game) @ p["wrel"] + p["brel"] + xs @ p["wroot"])
    cnt = a_in.sum(1, keepdims=True)
    inv = jnp.where(cnt > 0, 1.0 / jnp.where(cnt > 0, cnt, 1.0), 0.0)
    state = jax.nn.relu((inv * (a_in @ game)) @ p["wl"] + p["bl"] + state @ p["wr"])
    ps = sym_prop(a_ss)
    s0 = state; s1 = ps(s0); s2 = ps(s1); s3 = ps(s2)
    state = jax.nn.relu(s0 @ p["w20"] + s1 @ p["w21"] + s2 @ p["w22"] + s3 @ p["w23"] + p["b2"])
    return state @ p["wlin"] + p["blin"]


if __name__ == "__main__":
    key = jax.random.PRNGKey(0)
    G = 8                     # graphs per batch -> grid axis ('parallel', shards across TCs on v7x)
    NG, NS = 16, 16           # game vertices, state vertices per graph
    FG, FS = 5, 6             # game features (fixed to 5 by the module), state features
    H, O = 32, 8              # hidden_channels, out_channels
    E_GG, E_HIST, E_IN, E_SS = 48, 32, 32, 40

    k = jax.random.split(key, 12)
    xg = jax.random.normal(k[0], (G, NG, FG), jnp.float32)
    xs = jax.random.normal(k[1], (G, NS, FS), jnp.float32)
    gg_src = jax.random.randint(k[2], (G, E_GG), 0, NG)
    gg_dst = jax.random.randint(k[3], (G, E_GG), 0, NG)
    h_src = jax.random.randint(k[4], (G, E_HIST), 0, NG)
    h_dst = jax.random.randint(k[5], (G, E_HIST), 0, NS)
    edge_attr = jax.random.uniform(k[6], (G, E_HIST), jnp.float32, 0.5, 2.0)
    in_src = jax.random.randint(k[7], (G, E_IN), 0, NG)
    in_dst = jax.random.randint(k[8], (G, E_IN), 0, NS)
    ss_src = jax.random.randint(k[9], (G, E_SS), 0, NS)
    ss_dst = jax.random.randint(k[10], (G, E_SS), 0, NS)

    # edge_index dicts materialized as dense adjacency (glue; aggregation itself is in-kernel)
    a_gg = jax.vmap(lambda s, d: dense_adj(s, d, NG, NG))(gg_src, gg_dst)          # game->game ('to')
    a_hist = jax.vmap(lambda s, d, w: dense_adj(s, d, NG, NS, w))(h_src, h_dst, edge_attr)  # 'history'
    a_in = jax.vmap(lambda s, d: dense_adj(s, d, NG, NS))(in_src, in_dst)          # game->state ('in')
    a_ss = jax.vmap(lambda s, d: dense_adj(s, d, NS, NS))(ss_src, ss_dst)          # state->state

    params = init_params(k[11], H, O, FG, FS)

    out = jax.block_until_ready(run_model(xg, xs, a_gg, a_hist, a_in, a_ss, params))
    ref = jax.vmap(lambda a, b, c, d, e, f: reference(a, b, c, d, e, f, params))(
        xg, xs, a_gg, a_hist, a_in, a_ss)

    assert out.shape == (G, NS, O), out.shape
    max_err = float(jnp.max(jnp.abs(out - ref)))
    # bf16 MXU operands vs. pure-f32 reference -> loose elementwise tolerance
    assert jnp.allclose(out, ref, atol=5e-2, rtol=5e-2), max_err
    print("KERNEL_OK")
</pallas_src>

<mosaic_0001>
module attributes {stable_mosaic.version = 11 : i64} {
  func.func @_gnn_kernel(%arg0: i32, %arg1: memref<1x16x5xbf16, #tpu.memory_space<vmem>>, %arg2: memref<1x16x6xbf16, #tpu.memory_space<vmem>>, %arg3: memref<1x16x16xbf16, #tpu.memory_space<vmem>>, %arg4: memref<1x16x16xbf16, #tpu.memory_space<vmem>>, %arg5: memref<1x16x16xbf16, #tpu.memory_space<vmem>>, %arg6: memref<1x16x16xbf16, #tpu.memory_space<vmem>>, %arg7: memref<15x32xbf16, #tpu.memory_space<vmem>>, %arg8: memref<38x32xbf16, #tpu.memory_space<vmem>>, %arg9: memref<64x32xbf16, #tpu.memory_space<vmem>>, %arg10: memref<128x32xbf16, #tpu.memory_space<vmem>>, %arg11: memref<32x128xbf16, #tpu.memory_space<vmem>>, %arg12: memref<8x128xf32, #tpu.memory_space<vmem>>, %arg13: memref<1x16x128xf32, #tpu.memory_space<vmem>>) attributes {dimension_semantics = [#tpu.dimension_semantics<parallel>], iteration_bounds = array<i64: 8>, scalar_prefetch = 0 : i64, scratch_operands = 0 : i64, tpu.core_type = #tpu.core_type<tc>, window_params = [{transform_indices = @transform_0, window_bounds = array<i64: 1, 16, 5>}, {transform_indices = @transform_1, window_bounds = array<i64: 1, 16, 6>}, {transform_indices = @transform_2, window_bounds = array<i64: 1, 16, 16>}, {transform_indices = @transform_3, window_bounds = array<i64: 1, 16, 16>}, {transform_indices = @transform_4, window_bounds = array<i64: 1, 16, 16>}, {transform_indices = @transform_5, window_bounds = array<i64: 1, 16, 16>}, {pipeline_mode = #tpu.pipeline_mode<synchronous>, transform_indices = @transform_6, window_bounds = array<i64: 15, 32>}, {pipeline_mode = #tpu.pipeline_mode<synchronous>, transform_indices = @transform_7, window_bounds = array<i64: 38, 32>}, {pipeline_mode = #tpu.pipeline_mode<synchronous>, transform_indices = @transform_8, window_bounds = array<i64: 64, 32>}, {pipeline_mode = #tpu.pipeline_mode<synchronous>, transform_indices = @transform_9, window_bounds = array<i64: 128, 32>}, {pipeline_mode = #tpu.pipeline_mode<synchronous>, transform_indices = @transform_10, window_bounds = array<i64: 32, 128>}, {pipeline_mode = #tpu.pipeline_mode<synchronous>, transform_indices = @transform_11, window_bounds = array<i64: 8, 128>}, {transform_indices = @transform_12, window_bounds = array<i64: 1, 16, 128>}]} {
    %c0 = arith.constant 0 : index
    %c0_0 = arith.constant 0 : index
    %c0_1 = arith.constant 0 : index
    %0 = vector.load %arg3[%c0, %c0_0, %c0_1] : memref<1x16x16xbf16, #tpu.memory_space<vmem>>, vector<1x16x16xbf16>
    %1 = vector.shape_cast %0 : vector<1x16x16xbf16> to vector<16x16xbf16>
    %c0_2 = arith.constant 0 : index
    %c0_3 = arith.constant 0 : index
    %c0_4 = arith.constant 0 : index
    %2 = vector.load %arg1[%c0_2, %c0_3, %c0_4] : memref<1x16x5xbf16, #tpu.memory_space<vmem>>, vector<1x16x5xbf16>
    %3 = vector.shape_cast %2 : vector<1x16x5xbf16> to vector<16x5xbf16>
    %cst = arith.constant dense<0.000000e+00> : vector<16x5xf32>
    %4 = tpu.matmul %1, %3, %cst {dimension_numbers = #tpu.dot_dimension_numbers<[1], [0], [0], [1], [0, 0, 1, 1], [], []>} : vector<16x16xbf16>, vector<16x5xbf16>, vector<16x5xf32> -> vector<16x5xf32>
    %5 = arith.truncf %4 : vector<16x5xf32> to vector<16x5xbf16>
    %cst_5 = arith.constant dense<0.000000e+00> : vector<16x5xf32>
    %6 = tpu.matmul %1, %5, %cst_5 {dimension_numbers = #tpu.dot_dimension_numbers<[1], [0], [0], [1], [0, 0, 1, 1], [], []>} : vector<16x16xbf16>, vector<16x5xbf16>, vector<16x5xf32> -> vector<16x5xf32>
    %7 = arith.truncf %6 : vector<16x5xf32> to vector<16x5xbf16>
    %8 = tpu.concatenate %3, %5, %7 in 1 : vector<16x5xbf16>, vector<16x5xbf16>, vector<16x5xbf16> -> vector<16x15xbf16>
    %c0_6 = arith.constant 0 : index
    %c0_7 = arith.constant 0 : index
    %9 = vector.load %arg7[%c0_6, %c0_7] : memref<15x32xbf16, #tpu.memory_space<vmem>>, vector<15x32xbf16>
    %cst_8 = arith.constant dense<0.000000e+00> : vector<16x32xf32>
    %10 = tpu.matmul %8, %9, %cst_8 {dimension_numbers = #tpu.dot_dimension_numbers<[1], [0], [0], [1], [0, 0, 1, 1], [], []>} : vector<16x15xbf16>, vector<15x32xbf16>, vector<16x32xf32> -> vector<16x32xf32>
    %c0_9 = arith.constant 0 : index
    %c0_10 = arith.constant 0 : index
    %11 = vector.load %arg12[%c0_9, %c0_10] : memref<8x128xf32, #tpu.memory_space<vmem>>, vector<1x32xf32>
    %12 = vector.broadcast %11 : vector<1x32xf32> to vector<16x32xf32>
    %13 = arith.addf %10, %12 : vector<16x32xf32>
    %cst_11 = arith.constant 0.000000e+00 : f32
    %14 = vector.broadcast %cst_11 : f32 to vector<16x32xf32>
    %15 = arith.maximumf %13, %14 : vector<16x32xf32>
    %16 = arith.truncf %15 : vector<16x32xf32> to vector<16x32xbf16>
    %c0_12 = arith.constant 0 : index
    %c0_13 = arith.constant 0 : index
    %c0_14 = arith.constant 0 : index
    %17 = vector.load %arg4[%c0_12, %c0_13, %c0_14] : memref<1x16x16xbf16, #tpu.memory_space<vmem>>, vector<1x16x16xbf16>
    %18 = vector.shape_cast %17 : vector<1x16x16xbf16> to vector<16x16xbf16>
    %cst_15 = arith.constant dense<0.000000e+00> : vector<16x32xf32>
    %19 = tpu.matmul %18, %16, %cst_15 {dimension_numbers = #tpu.dot_dimension_numbers<[1], [0], [0], [1], [0, 0, 1, 1], [], []>} : vector<16x16xbf16>, vector<16x32xbf16>, vector<16x32xf32> -> vector<16x32xf32>
    %20 = arith.truncf %19 : vector<16x32xf32> to vector<16x32xbf16>
    %c0_16 = arith.constant 0 : index
    %c0_17 = arith.constant 0 : index
    %c0_18 = arith.constant 0 : index
    %21 = vector.load %arg2[%c0_16, %c0_17, %c0_18] : memref<1x16x6xbf16, #tpu.memory_space<vmem>>, vector<1x16x6xbf16>
    %22 = vector.shape_cast %21 : vector<1x16x6xbf16> to vector<16x6xbf16>
    %23 = tpu.concatenate %20, %22 in 1 : vector<16x32xbf16>, vector<16x6xbf16> -> vector<16x38xbf16>
    %c0_19 = arith.constant 0 : index
    %c0_20 = arith.constant 0 : index
    %24 = vector.load %arg8[%c0_19, %c0_20] : memref<38x32xbf16, #tpu.memory_space<vmem>>, vector<38x32xbf16>
    %cst_21 = arith.constant dense<0.000000e+00> : vector<16x32xf32>
    %25 = tpu.matmul %23, %24, %cst_21 {dimension_numbers = #tpu.dot_dimension_numbers<[1], [0], [0], [1], [0, 0, 1, 1], [], []>} : vector<16x38xbf16>, vector<38x32xbf16>, vector<16x32xf32> -> vector<16x32xf32>
    %c1 = arith.constant 1 : index
    %c0_22 = arith.constant 0 : index
    %26 = vector.load %arg12[%c1, %c0_22] : memref<8x128xf32, #tpu.memory_space<vmem>>, vector<1x32xf32>
    %27 = vector.broadcast %26 : vector<1x32xf32> to vector<16x32xf32>
    %28 = arith.addf %25, %27 : vector<16x32xf32>
    %cst_23 = arith.constant 0.000000e+00 : f32
    %29 = vector.broadcast %cst_23 : f32 to vector<16x32xf32>
    %30 = arith.maximumf %28, %29 : vector<16x32xf32>
    %31 = arith.truncf %30 : vector<16x32xf32> to vector<16x32xbf16>
    %c0_24 = arith.constant 0 : index
    %c0_25 = arith.constant 0 : index
    %c0_26 = arith.constant 0 : index
    %32 = vector.load %arg5[%c0_24, %c0_25, %c0_26] : memref<1x16x16xbf16, #tpu.memory_space<vmem>>, vector<1x16x16xbf16>
    %33 = vector.shape_cast %32 : vector<1x16x16xbf16> to vector<16x16xbf16>
    %cst_27 = arith.constant dense<0.000000e+00> : vector<16x32xf32>
    %34 = tpu.matmul %33, %16, %cst_27 {dimension_numbers = #tpu.dot_dimension_numbers<[1], [0], [0], [1], [0, 0, 1, 1], [], []>} : vector<16x16xbf16>, vector<16x32xbf16>, vector<16x32xf32> -> vector<16x32xf32>
    %35 = arith.truncf %34 : vector<16x32xf32> to vector<16x32xbf16>
    %36 = tpu.concatenate %35, %31 in 1 : vector<16x32xbf16>, vector<16x32xbf16> -> vector<16x64xbf16>
    %c0_28 = arith.constant 0 : index
    %c0_29 = arith.constant 0 : index
    %37 = vector.load %arg9[%c0_28, %c0_29] : memref<64x32xbf16, #tpu.memory_space<vmem>>, vector<64x32xbf16>
    %cst_30 = arith.constant dense<0.000000e+00> : vector<16x32xf32>
    %38 = tpu.matmul %36, %37, %cst_30 {dimension_numbers = #tpu.dot_dimension_numbers<[1], [0], [0], [1], [0, 0, 1, 1], [], []>} : vector<16x64xbf16>, vector<64x32xbf16>, vector<16x32xf32> -> vector<16x32xf32>
    %c2 = arith.constant 2 : index
    %c0_31 = arith.constant 0 : index
    %39 = vector.load %arg12[%c2, %c0_31] : memref<8x128xf32, #tpu.memory_space<vmem>>, vector<1x32xf32>
    %40 = vector.broadcast %39 : vector<1x32xf32> to vector<16x32xf32>
    %41 = arith.addf %38, %40 : vector<16x32xf32>
    %cst_32 = arith.constant 0.000000e+00 : f32
    %42 = vector.broadcast %cst_32 : f32 to vector<16x32xf32>
    %43 = arith.maximumf %41, %42 : vector<16x32xf32>
    %44 = arith.truncf %43 : vector<16x32xf32> to vector<16x32xbf16>
    %c0_33 = arith.constant 0 : index
    %c0_34 = arith.constant 0 : index
    %c0_35 = arith.constant 0 : index
    %45 = vector.load %arg6[%c0_33, %c0_34, %c0_35] : memref<1x16x16xbf16, #tpu.memory_space<vmem>>, vector<1x16x16xbf16>
    %46 = vector.shape_cast %45 : vector<1x16x16xbf16> to vector<16x16xbf16>
    %cst_36 = arith.constant dense<0.000000e+00> : vector<16x32xf32>
    %47 = tpu.matmul %46, %44, %cst_36 {dimension_numbers = #tpu.dot_dimension_numbers<[1], [0], [0], [1], [0, 0, 1, 1], [], []>} : vector<16x16xbf16>, vector<16x32xbf16>, vector<16x32xf32> -> vector<16x32xf32>
    %48 = arith.truncf %47 : vector<16x32xf32> to vector<16x32xbf16>
    %cst_37 = arith.constant dense<0.000000e+00> : vector<16x32xf32>
    %49 = tpu.matmul %46, %48, %cst_37 {dimension_numbers = #tpu.dot_dimension_numbers<[1], [0], [0], [1], [0, 0, 1, 1], [], []>} : vector<16x16xbf16>, vector<16x32xbf16>, vector<16x32xf32> -> vector<16x32xf32>
    %50 = arith.truncf %49 : vector<16x32xf32> to vector<16x32xbf16>
    %cst_38 = arith.constant dense<0.000000e+00> : vector<16x32xf32>
    %51 = tpu.matmul %46, %50, %cst_38 {dimension_numbers = #tpu.dot_dimension_numbers<[1], [0], [0], [1], [0, 0, 1, 1], [], []>} : vector<16x16xbf16>, vector<16x32xbf16>, vector<16x32xf32> -> vector<16x32xf32>
    %52 = arith.truncf %51 : vector<16x32xf32> to vector<16x32xbf16>
    %53 = tpu.concatenate %44, %48, %50, %52 in 1 : vector<16x32xbf16>, vector<16x32xbf16>, vector<16x32xbf16>, vector<16x32xbf16> -> vector<16x128xbf16>
    %c0_39 = arith.constant 0 : index
    %c0_40 = arith.constant 0 : index
    %54 = vector.load %arg10[%c0_39, %c0_40] : memref<128x32xbf16, #tpu.memory_space<vmem>>, vector<128x32xbf16>
    %cst_41 = arith.constant dense<0.000000e+00> : vector<16x32xf32>
    %55 = tpu.matmul %53, %54, %cst_41 {dimension_numbers = #tpu.dot_dimension_numbers<[1], [0], [0], [1], [0, 0, 1, 1], [], []>} : vector<16x128xbf16>, vector<128x32xbf16>, vector<16x32xf32> -> vector<16x32xf32>
    %c3 = arith.constant 3 : index
    %c0_42 = arith.constant 0 : index
    %56 = vector.load %arg12[%c3, %c0_42] : memref<8x128xf32, #tpu.memory_space<vmem>>, vector<1x32xf32>
    %57 = vector.broadcast %56 : vector<1x32xf32> to vector<16x32xf32>
    %58 = arith.addf %55, %57 : vector<16x32xf32>
    %cst_43 = arith.constant 0.000000e+00 : f32
    %59 = vector.broadcast %cst_43 : f32 to vector<16x32xf32>
    %60 = arith.maximumf %58, %59 : vector<16x32xf32>
    %61 = arith.truncf %60 : vector<16x32xf32> to vector<16x32xbf16>
    %c0_44 = arith.constant 0 : index
    %c0_45 = arith.constant 0 : index
    %62 = vector.load %arg11[%c0_44, %c0_45] : memref<32x128xbf16, #tpu.memory_space<vmem>>, vector<32x128xbf16>
    %cst_46 = arith.constant dense<0.000000e+00> : vector<16x128xf32>
    %63 = tpu.matmul %61, %62, %cst_46 {dimension_numbers = #tpu.dot_dimension_numbers<[1], [0], [0], [1], [0, 0, 1, 1], [], []>} : vector<16x32xbf16>, vector<32x128xbf16>, vector<16x128xf32> -> vector<16x128xf32>
    %c4 = arith.constant 4 : index
    %c0_47 = arith.constant 0 : index
    %64 = vector.load %arg12[%c4, %c0_47] : memref<8x128xf32, #tpu.memory_space<vmem>>, vector<1x128xf32>
    %65 = vector.broadcast %64 : vector<1x128xf32> to vector<16x128xf32>
    %66 = arith.addf %63, %65 : vector<16x128xf32>
    %c0_48 = arith.constant 0 : index
    %c0_49 = arith.constant 0 : index
    %c0_50 = arith.constant 0 : index
    %67 = vector.load %arg13[%c0_48, %c0_49, %c0_50] : memref<1x16x128xf32, #tpu.memory_space<vmem>>, vector<1x16x128xf32>
    %68 = vector.shape_cast %67 : vector<1x16x128xf32> to vector<16x128xf32>
    %69 = vector.shape_cast %66 : vector<16x128xf32> to vector<1x16x128xf32>
    tpu.vector_store %arg13[%c0_48, %c0_49, %c0_50], %69 {strides = array<i32>} : memref<1x16x128xf32, #tpu.memory_space<vmem>>, vector<1x16x128xf32>,
    return
  }
  func.func @transform_0(%arg0: i32) -> (i32, i32, i32) {
    %c0_i32 = arith.constant 0 : i32
    %c0_i32_0 = arith.constant 0 : i32
    %c0_i32_1 = arith.constant 0 : i32
    return %arg0, %c0_i32, %c0_i32_0 : i32, i32, i32
  }
  func.func @transform_1(%arg0: i32) -> (i32, i32, i32) {
    %c0_i32 = arith.constant 0 : i32
    %c0_i32_0 = arith.constant 0 : i32
    %c0_i32_1 = arith.constant 0 : i32
    return %arg0, %c0_i32, %c0_i32_0 : i32, i32, i32
  }
  func.func @transform_2(%arg0: i32) -> (i32, i32, i32) {
    %c0_i32 = arith.constant 0 : i32
    %c0_i32_0 = arith.constant 0 : i32
    %c0_i32_1 = arith.constant 0 : i32
    return %arg0, %c0_i32, %c0_i32_0 : i32, i32, i32
  }
  func.func @transform_3(%arg0: i32) -> (i32, i32, i32) {
    %c0_i32 = arith.constant 0 : i32
    %c0_i32_0 = arith.constant 0 : i32
    %c0_i32_1 = arith.constant 0 : i32
    return %arg0, %c0_i32, %c0_i32_0 : i32, i32, i32
  }
  func.func @transform_4(%arg0: i32) -> (i32, i32, i32) {
    %c0_i32 = arith.constant 0 : i32
    %c0_i32_0 = arith.constant 0 : i32
    %c0_i32_1 = arith.constant 0 : i32
    return %arg0, %c0_i32, %c0_i32_0 : i32, i32, i32
  }
  func.func @transform_5(%arg0: i32) -> (i32, i32, i32) {
    %c0_i32 = arith.constant 0 : i32
    %c0_i32_0 = arith.constant 0 : i32
    %c0_i32_1 = arith.constant 0 : i32
    return %arg0, %c0_i32, %c0_i32_0 : i32, i32, i32
  }
  func.func @transform_6(%arg0: i32) -> (i32, i32) {
    %c0_i32 = arith.constant 0 : i32
    %c0_i32_0 = arith.constant 0 : i32
    %c0_i32_1 = arith.constant 0 : i32
    return %c0_i32, %c0_i32_0 : i32, i32
  }
  func.func @transform_7(%arg0: i32) -> (i32, i32) {
    %c0_i32 = arith.constant 0 : i32
    %c0_i32_0 = arith.constant 0 : i32
    %c0_i32_1 = arith.constant 0 : i32
    return %c0_i32, %c0_i32_0 : i32, i32
  }
  func.func @transform_8(%arg0: i32) -> (i32, i32) {
    %c0_i32 = arith.constant 0 : i32
    %c0_i32_0 = arith.constant 0 : i32
    %c0_i32_1 = arith.constant 0 : i32
    return %c0_i32, %c0_i32_0 : i32, i32
  }
  func.func @transform_9(%arg0: i32) -> (i32, i32) {
    %c0_i32 = arith.constant 0 : i32
    %c0_i32_0 = arith.constant 0 : i32
    %c0_i32_1 = arith.constant 0 : i32
    return %c0_i32, %c0_i32_0 : i32, i32
  }
  func.func @transform_10(%arg0: i32) -> (i32, i32) {
    %c0_i32 = arith.constant 0 : i32
    %c0_i32_0 = arith.constant 0 : i32
    %c0_i32_1 = arith.constant 0 : i32
    return %c0_i32, %c0_i32_0 : i32, i32
  }
  func.func @transform_11(%arg0: i32) -> (i32, i32) {
    %c0_i32 = arith.constant 0 : i32
    %c0_i32_0 = arith.constant 0 : i32
    %c0_i32_1 = arith.constant 0 : i32
    return %c0_i32, %c0_i32_0 : i32, i32
  }
  func.func @transform_12(%arg0: i32) -> (i32, i32, i32) {
    %c0_i32 = arith.constant 0 : i32
    %c0_i32_0 = arith.constant 0 : i32
    %c0_i32_1 = arith.constant 0 : i32
    return %arg0, %c0_i32, %c0_i32_0 : i32, i32, i32
  }
}

</mosaic_0001>

<llo_original>
// kernel: tpu_custom_call.1
$region0: #{tpu_custom_call.1}
  #allocation0 [shape = 'u32[]', space=smem, size = 0x4, offset = 0x4, fixed_abs, tag = 'smem constant byte address 0x4 - core index']
  #allocation1 [shape = 'u32[144,128]{1,0:T(1,128)}', space=vmem, size = 0x12000, scoped, tag = 'internal scratch']
  %s0 = inlined_call_operand.vmem [shape: bf16[8,16,5], index: 0, kind: input, shape index: {}]
  %s1 = inlined_call_operand.vmem [shape: bf16[8,16,6], index: 1, kind: input, shape index: {}]
  %s2 = inlined_call_operand.vmem [shape: bf16[8,16,16], index: 2, kind: input, shape index: {}]
  %s3 = inlined_call_operand.vmem [shape: bf16[8,16,16], index: 3, kind: input, shape index: {}]
  %s4 = inlined_call_operand.vmem [shape: bf16[8,16,16], index: 4, kind: input, shape index: {}]
  %s5 = inlined_call_operand.vmem [shape: bf16[8,16,16], index: 5, kind: input, shape index: {}]
  %s6 = inlined_call_operand.hbm [shape: bf16[15,32], index: 6, kind: input, shape index: {}]
  %s7 = inlined_call_operand.vmem [shape: bf16[38,32], index: 7, kind: input, shape index: {}]
  %s8 = inlined_call_operand.vmem [shape: bf16[64,32], index: 8, kind: input, shape index: {}]
  %s9 = inlined_call_operand.vmem [shape: bf16[128,32], index: 9, kind: input, shape index: {}]
  %s10 = inlined_call_operand.vmem [shape: bf16[32,128], index: 10, kind: input, shape index: {}]
  %s11 = inlined_call_operand.hbm [shape: f32[8,128], index: 11, kind: input, shape index: {}]
  %s12 = inlined_call_operand.hbm [shape: f32[8,16,128], index: 12, kind: output, shape index: {}]
  %s13 = sld [smem:[#allocation0]]
  $region89: #{tpu_custom_call.1} parent=0
    _
  %s15 = ssub.s32 1, %s13
  %s16 = scalar_select 0, %s15, %s13
  $region1: #{tpu_custom_call.1} parent=0
    #allocation2 [shape = 'u8[4096]{0}', space=vmem, size = 0x1000, scoped, tag = 'input window, operand 6, single buffered']
    #allocation3 [shape = 's32[2]{0}', space=sflag, size = 0x8, scoped, tag = 'scoped memory for tpu_custom_call.1']
    #allocation4 [shape = 's32[2]{0}', space=sflag, size = 0x8, scoped, tag = 'scoped memory for tpu_custom_call.1']
    #allocation5 [shape = 'u8[4096]{0}', space=vmem, size = 0x1000, scoped, tag = 'input window, operand 11, single buffered']
    #allocation6 [shape = 's32[1]{0}', space=sflag, size = 0x4, scoped, tag = 'scoped memory for tpu_custom_call.1']
    #allocation7 [shape = 'u8[16384]{0}', space=vmem, size = 0x4000, scoped, tag = 'output window, operand 0']
    %17 = vsyncpa [#allocation3], 0
    %18 = vsyncpa [#allocation6], 0
    %19 = vsyncpa [#allocation4], 0
    %s20 = scalar_lea.sflag [#allocation4], 1
    %21 = vsyncpa %s20, 0
    loop: start=0, step=1, limit=10
    $region2: #{tpu_custom_call.1} parent=1 // loop_pre_header
      _
    $region3: #{tpu_custom_call.1} parent=1 // loop_header
      %s23 = sphi 0, %s27
      %p24 = scmp.ge.s32.totalorder %s23, 10
      %s33 = sphi 0, %s35
      %s36 = sphi 0, %s33
      %s37 = sphi 0, %s36
      %s53 = sphi 0, %s37
      %s59 = sphi 0, %s61
      %s62 = sphi 0, %s59
      %s63 = sphi 0, %s62
      %s79 = sphi 0, %s63
      %s85 = sphi 0, %s87
      %s88 = sphi 0, %s85
      %s89 = sphi 0, %s88
      %s105 = sphi 0, %s89
      %s111 = sphi 0, %s113
      %s114 = sphi 0, %s111
      %s115 = sphi 0, %s114
      %s131 = sphi 0, %s115
      %s137 = sphi 0, %s139
      %s140 = sphi 0, %s137
      %s141 = sphi 0, %s140
      %s157 = sphi 0, %s141
      %s163 = sphi 0, %s165
      %s166 = sphi 0, %s163
      %s167 = sphi 0, %s166
      %s183 = sphi 0, %s167
      %s187 = sphi 0, %s187
      %s189 = sphi 0, %s187
      %s190 = sphi 0, %s189
      %s204 = sphi 0, %s190
      %s208 = sphi 0, %s208
      %s210 = sphi 0, %s208
      %s211 = sphi 0, %s210
      %s225 = sphi 0, %s211
      %s229 = sphi 0, %s229
      %s231 = sphi 0, %s229
      %s232 = sphi 0, %s231
      %s246 = sphi 0, %s232
      %s250 = sphi 0, %s250
      %s252 = sphi 0, %s250
      %s253 = sphi 0, %s252
      %s267 = sphi 0, %s253
      %s271 = sphi 0, %s271
      %s273 = sphi 0, %s271
      %s274 = sphi 0, %s273
      %s288 = sphi 0, %s274
      %s292 = sphi 0, %s292
      %s294 = sphi 0, %s292
      %s295 = sphi 0, %s294
      %s309 = sphi 0, %s295
      %s315 = sphi 0, %s317
      %s318 = sphi 0, %s315
      %s319 = sphi 0, %s318
      %s335 = sphi 0, %s319
    $region4: #{tpu_custom_call.1} parent=1 // loop_header_branch
      %26 = sbr.rel (%p24) target = $region8
    $region5: #{tpu_custom_call.1} parent=1 // loop_body
      %s28 = ssub.s32 %s23, 1
      %s29 = ssub.s32 %s23, 2
      %s30 = sadd.s32 %s23, 1
      %s31 = ssub.s32 %s23, %s30
      %p32 = scmp.eq.s32.totalorder %s31, 0
      %s34 = sadd.s32 %s33, 1
      %s35 = scalar_select %p32, %s33, %s34
      %p38 = pneg %p32
      %p39 = scmp.eq.s32.totalorder %s23, 7
      %p40 = por %p38, %p39
      %p41 = scmp.ne.s32.totalorder %s33, %s36
      %p42 = scmp.eq.s32.totalorder %s23, 0
      %p43 = por %p41, %p42
      %p44 = scmp.ne.s32.totalorder %s33, %s36
      %p45 = scmp.eq.s32.totalorder %s28, 7
      %p46 = por %p44, %p45
      %p47 = scmp.ne.s32.totalorder %s36, %s37
      %p48 = scmp.eq.s32.totalorder %s28, 0
      %p49 = por %p47, %p48
      %p50 = scmp.ne.s32.totalorder %s36, %s37
      %p51 = scmp.eq.s32.totalorder %s29, 7
      %p52 = por %p50, %p51
      %p54 = scmp.ne.s32.totalorder %s37, %s53
      %p55 = scmp.eq.s32.totalorder %s29, 0
      %p56 = por %p54, %p55
      %s57 = ssub.s32 %s23, %s30
      %p58 = scmp.eq.s32.totalorder %s57, 0
      %s60 = sadd.s32 %s59, 1
      %s61 = scalar_select %p58, %s59, %s60
      %p64 = pneg %p58
      %p65 = scmp.eq.s32.totalorder %s23, 7
      %p66 = por %p64, %p65
      %p67 = scmp.ne.s32.totalorder %s59, %s62
      %p68 = scmp.eq.s32.totalorder %s23, 0
      %p69 = por %p67, %p68
      %p70 = scmp.ne.s32.totalorder %s59, %s62
      %p71 = scmp.eq.s32.totalorder %s28, 7
      %p72 = por %p70, %p71
      %p73 = scmp.ne.s32.totalorder %s62, %s63
      %p74 = scmp.eq.s32.totalorder %s28, 0
      %p75 = por %p73, %p74
      %p76 = scmp.ne.s32.totalorder %s62, %s63
      %p77 = scmp.eq.s32.totalorder %s29, 7
      %p78 = por %p76, %p77
      %p80 = scmp.ne.s32.totalorder %s63, %s79
      %p81 = scmp.eq.s32.totalorder %s29, 0
      %p82 = por %p80, %p81
      %s83 = ssub.s32 %s23, %s30
      %p84 = scmp.eq.s32.totalorder %s83, 0
      %s86 = sadd.s32 %s85, 1
      %s87 = scalar_select %p84, %s85, %s86
      %p90 = pneg %p84
      %p91 = scmp.eq.s32.totalorder %s23, 7
      %p92 = por %p90, %p91
      %p93 = scmp.ne.s32.totalorder %s85, %s88
      %p94 = scmp.eq.s32.totalorder %s23, 0
      %p95 = por %p93, %p94
      %p96 = scmp.ne.s32.totalorder %s85, %s88
      %p97 = scmp.eq.s32.totalorder %s28, 7
      %p98 = por %p96, %p97
      %p99 = scmp.ne.s32.totalorder %s88, %s89
      %p100 = scmp.eq.s32.totalorder %s28, 0
      %p101 = por %p99, %p100
      %p102 = scmp.ne.s32.totalorder %s88, %s89
      %p103 = scmp.eq.s32.totalorder %s29, 7
      %p104 = por %p102, %p103
      %p106 = scmp.ne.s32.totalorder %s89, %s105
      %p107 = scmp.eq.s32.totalorder %s29, 0
      %p108 = por %p106, %p107
      %s109 = ssub.s32 %s23, %s30
      %p110 = scmp.eq.s32.totalorder %s109, 0
      %s112 = sadd.s32 %s111, 1
      %s113 = scalar_select %p110, %s111, %s112
      %p116 = pneg %p110
      %p117 = scmp.eq.s32.totalorder %s23, 7
      %p118 = por %p116, %p117
      %p119 = scmp.ne.s32.totalorder %s111, %s114
      %p120 = scmp.eq.s32.totalorder %s23, 0
      %p121 = por %p119, %p120
      %p122 = scmp.ne.s32.totalorder %s111, %s114
      %p123 = scmp.eq.s32.totalorder %s28, 7
      %p124 = por %p122, %p123
      %p125 = scmp.ne.s32.totalorder %s114, %s115
      %p126 = scmp.eq.s32.totalorder %s28, 0
      %p127 = por %p125, %p126
      %p128 = scmp.ne.s32.totalorder %s114, %s115
      %p129 = scmp.eq.s32.totalorder %s29, 7
      %p130 = por %p128, %p129
      %p132 = scmp.ne.s32.totalorder %s115, %s131
      %p133 = scmp.eq.s32.totalorder %s29, 0
      %p134 = por %p132, %p133
      %s135 = ssub.s32 %s23, %s30
      %p136 = scmp.eq.s32.totalorder %s135, 0
      %s138 = sadd.s32 %s137, 1
      %s139 = scalar_select %p136, %s137, %s138
      %p142 = pneg %p136
      %p143 = scmp.eq.s32.totalorder %s23, 7
      %p144 = por %p142, %p143
      %p145 = scmp.ne.s32.totalorder %s137, %s140
      %p146 = scmp.eq.s32.totalorder %s23, 0
      %p147 = por %p145, %p146
      %p148 = scmp.ne.s32.totalorder %s137, %s140
      %p149 = scmp.eq.s32.totalorder %s28, 7
      %p150 = por %p148, %p149
      %p151 = scmp.ne.s32.totalorder %s140, %s141
      %p152 = scmp.eq.s32.totalorder %s28, 0
      %p153 = por %p151, %p152
      %p154 = scmp.ne.s32.totalorder %s140, %s141
      %p155 = scmp.eq.s32.totalorder %s29, 7
      %p156 = por %p154, %p155
      %p158 = scmp.ne.s32.totalorder %s141, %s157
      %p159 = scmp.eq.s32.totalorder %s29, 0
      %p160 = por %p158, %p159
      %s161 = ssub.s32 %s23, %s30
      %p162 = scmp.eq.s32.totalorder %s161, 0
      %s164 = sadd.s32 %s163, 1
      %s165 = scalar_select %p162, %s163, %s164
      %p168 = pneg %p162
      %p169 = scmp.eq.s32.totalorder %s23, 7
      %p170 = por %p168, %p169
      %p171 = scmp.ne.s32.totalorder %s163, %s166
      %p172 = scmp.eq.s32.totalorder %s23, 0
      %p173 = por %p171, %p172
      %p174 = scmp.ne.s32.totalorder %s163, %s166
      %p175 = scmp.eq.s32.totalorder %s28, 7
      %p176 = por %p174, %p175
      %p177 = scmp.ne.s32.totalorder %s166, %s167
      %p178 = scmp.eq.s32.totalorder %s28, 0
      %p179 = por %p177, %p178
      %p180 = scmp.ne.s32.totalorder %s166, %s167
      %p181 = scmp.eq.s32.totalorder %s29, 7
      %p182 = por %p180, %p181
      %p184 = scmp.ne.s32.totalorder %s167, %s183
      %p185 = scmp.eq.s32.totalorder %s29, 0
      %p186 = por %p184, %p185
      %s188 = sadd.s32 %s187, 1
      %p191 = scmp.eq.s32.totalorder %s23, 7
      %p192 = scmp.ne.s32.totalorder %s187, %s189
      %p193 = scmp.eq.s32.totalorder %s23, 0
      %p194 = por %p192, %p193
      %p195 = scmp.ne.s32.totalorder %s187, %s189
      %p196 = scmp.eq.s32.totalorder %s28, 7
      %p197 = por %p195, %p196
      %p198 = scmp.ne.s32.totalorder %s189, %s190
      %p199 = scmp.eq.s32.totalorder %s28, 0
      %p200 = por %p198, %p199
      %p201 = scmp.ne.s32.totalorder %s189, %s190
      %p202 = scmp.eq.s32.totalorder %s29, 7
      %p203 = por %p201, %p202
      %p205 = scmp.ne.s32.totalorder %s190, %s204
      %p206 = scmp.eq.s32.totalorder %s29, 0
      %p207 = por %p205, %p206
      %s209 = sadd.s32 %s208, 1
      %p212 = scmp.eq.s32.totalorder %s23, 7
      %p213 = scmp.ne.s32.totalorder %s208, %s210
      %p214 = scmp.eq.s32.totalorder %s23, 0
      %p215 = por %p213, %p214
      %p216 = scmp.ne.s32.totalorder %s208, %s210
      %p217 = scmp.eq.s32.totalorder %s28, 7
      %p218 = por %p216, %p217
      %p219 = scmp.ne.s32.totalorder %s210, %s211
      %p220 = scmp.eq.s32.totalorder %s28, 0
      %p221 = por %p219, %p220
      %p222 = scmp.ne.s32.totalorder %s210, %s211
      %p223 = scmp.eq.s32.totalorder %s29, 7
      %p224 = por %p222, %p223
      %p226 = scmp.ne.s32.totalorder %s211, %s225
      %p227 = scmp.eq.s32.totalorder %s29, 0
      %p228 = por %p226, %p227
      %s230 = sadd.s32 %s229, 1
      %p233 = scmp.eq.s32.totalorder %s23, 7
      %p234 = scmp.ne.s32.totalorder %s229, %s231
      %p235 = scmp.eq.s32.totalorder %s23, 0
      %p236 = por %p234, %p235
      %p237 = scmp.ne.s32.totalorder %s229, %s231
      %p238 = scmp.eq.s32.totalorder %s28, 7
      %p239 = por %p237, %p238
      %p240 = scmp.ne.s32.totalorder %s231, %s232
      %p241 = scmp.eq.s32.totalorder %s28, 0
      %p242 = por %p240, %p241
      %p243 = scmp.ne.s32.totalorder %s231, %s232
      %p244 = scmp.eq.s32.totalorder %s29, 7
      %p245 = por %p243, %p244
      %p247 = scmp.ne.s32.totalorder %s232, %s246
      %p248 = scmp.eq.s32.totalorder %s29, 0
      %p249 = por %p247, %p248
      %s251 = sadd.s32 %s250, 1
      %p254 = scmp.eq.s32.totalorder %s23, 7
      %p255 = scmp.ne.s32.totalorder %s250, %s252
      %p256 = scmp.eq.s32.totalorder %s23, 0
      %p257 = por %p255, %p256
      %p258 = scmp.ne.s32.totalorder %s250, %s252
      %p259 = scmp.eq.s32.totalorder %s28, 7
      %p260 = por %p258, %p259
      %p261 = scmp.ne.s32.totalorder %s252, %s253
      %p262 = scmp.eq.s32.totalorder %s28, 0
      %p263 = por %p261, %p262
      %p264 = scmp.ne.s32.totalorder %s252, %s253
      %p265 = scmp.eq.s32.totalorder %s29, 7
      %p266 = por %p264, %p265
      %p268 = scmp.ne.s32.totalorder %s253, %s267
      %p269 = scmp.eq.s32.totalorder %s29, 0
      %p270 = por %p268, %p269
      %s272 = sadd.s32 %s271, 1
      %p275 = scmp.eq.s32.totalorder %s23, 7
      %p276 = scmp.ne.s32.totalorder %s271, %s273
      %p277 = scmp.eq.s32.totalorder %s23, 0
      %p278 = por %p276, %p277
      %p279 = scmp.ne.s32.totalorder %s271, %s273
      %p280 = scmp.eq.s32.totalorder %s28, 7
      %p281 = por %p279, %p280
      %p282 = scmp.ne.s32.totalorder %s273, %s274
      %p283 = scmp.eq.s32.totalorder %s28, 0
      %p284 = por %p282, %p283
      %p285 = scmp.ne.s32.totalorder %s273, %s274
      %p286 = scmp.eq.s32.totalorder %s29, 7
      %p287 = por %p285, %p286
      %p289 = scmp.ne.s32.totalorder %s274, %s288
      %p290 = scmp.eq.s32.totalorder %s29, 0
      %p291 = por %p289, %p290
      %s293 = sadd.s32 %s292, 1
      %p296 = scmp.eq.s32.totalorder %s23, 7
      %p297 = scmp.ne.s32.totalorder %s292, %s294
      %p298 = scmp.eq.s32.totalorder %s23, 0
      %p299 = por %p297, %p298
      %p300 = scmp.ne.s32.totalorder %s292, %s294
      %p301 = scmp.eq.s32.totalorder %s28, 7
      %p302 = por %p300, %p301
      %p303 = scmp.ne.s32.totalorder %s294, %s295
      %p304 = scmp.eq.s32.totalorder %s28, 0
      %p305 = por %p303, %p304
      %p306 = scmp.ne.s32.totalorder %s294, %s295
      %p307 = scmp.eq.s32.totalorder %s29, 7
      %p308 = por %p306, %p307
      %p310 = scmp.ne.s32.totalorder %s295, %s309
      %p311 = scmp.eq.s32.totalorder %s29, 0
      %p312 = por %p310, %p311
      %s313 = ssub.s32 %s23, %s30
      %p314 = scmp.eq.s32.totalorder %s313, 0
      %s316 = sadd.s32 %s315, 1
      %s317 = scalar_select %p314, %s315, %s316
      %p320 = pneg %p314
      %p321 = scmp.eq.s32.totalorder %s23, 7
      %p322 = por %p320, %p321
      %p323 = scmp.ne.s32.totalorder %s315, %s318
      %p324 = scmp.eq.s32.totalorder %s23, 0
      %p325 = por %p323, %p324
      %p326 = scmp.ne.s32.totalorder %s315, %s318
      %p327 = scmp.eq.s32.totalorder %s28, 7
      %p328 = por %p326, %p327
      %p329 = scmp.ne.s32.totalorder %s318, %s319
      %p330 = scmp.eq.s32.totalorder %s28, 0
      %p331 = por %p329, %p330
      %p332 = scmp.ne.s32.totalorder %s318, %s319
      %p333 = scmp.eq.s32.totalorder %s29, 7
      %p334 = por %p332, %p333
      %p336 = scmp.ne.s32.totalorder %s319, %s335
      %p337 = scmp.eq.s32.totalorder %s29, 0
      %p338 = por %p336, %p337
      %p339 = scmp.le.s32.totalorder 1, %s23
      %p340 = scmp.lt.s32.totalorder %s23, 9
      %p341 = pnand %p339, %p340
      %p342 = pneg %p341
      // Predicated region
      $region9: #{tpu_custom_call.1} parent=5 // pred_check
        _
      $region10: #{tpu_custom_call.1} parent=5 // pred_check_branch
        %344 = sbr.rel (%p341) target = $region12
      $region11: #{tpu_custom_call.1} parent=5 // pred_region
        %s345 = ssub.s32 %s23, 1
        // Predicated region
        $region13: #{tpu_custom_call.1} parent=11 // pred_check
          %p346 = pneg %p200
        $region14: #{tpu_custom_call.1} parent=11 // pred_check_branch
          %348 = sbr.rel (%p346) target = $region16
        $region15: #{tpu_custom_call.1} parent=11 // pred_region
          %s350 = ssub.s32 128, 128
          %351 = vsyncadd [#allocation3], %s350
          %s352 = sshll.u32 [#allocation2], 4
          %s353 = int_to_ptr.vmem [resolvable:$true] %s352
          %358 = dma.hbm_to_vmem [thread:$0]  %s6, 128, %s353, [#allocation3], 64, 64, 4
        $region16: #{tpu_custom_call.1} parent=11 // pred_fallthru
          _
        // Predicated region
        $region17: #{tpu_custom_call.1} parent=11 // pred_check
          %p359 = pneg %p221
        $region18: #{tpu_custom_call.1} parent=11 // pred_check_branch
          %361 = sbr.rel (%p359) target = $region20
        $region19: #{tpu_custom_call.1} parent=11 // pred_region
          _
        $region20: #{tpu_custom_call.1} parent=11 // pred_fallthru
          _
        // Predicated region
        $region21: #{tpu_custom_call.1} parent=11 // pred_check
          %p362 = pneg %p242
        $region22: #{tpu_custom_call.1} parent=11 // pred_check_branch
          %364 = sbr.rel (%p362) target = $region24
        $region23: #{tpu_custom_call.1} parent=11 // pred_region
          _
        $region24: #{tpu_custom_call.1} parent=11 // pred_fallthru
          _
        // Predicated region
        $region25: #{tpu_custom_call.1} parent=11 // pred_check
          %p365 = pneg %p263
        $region26: #{tpu_custom_call.1} parent=11 // pred_check_branch
          %367 = sbr.rel (%p365) target = $region28
        $region27: #{tpu_custom_call.1} parent=11 // pred_region
          _
        $region28: #{tpu_custom_call.1} parent=11 // pred_fallthru
          _
        // Predicated region
        $region29: #{tpu_custom_call.1} parent=11 // pred_check
          %p368 = pneg %p284
        $region30: #{tpu_custom_call.1} parent=11 // pred_check_branch
          %370 = sbr.rel (%p368) target = $region32
        $region31: #{tpu_custom_call.1} parent=11 // pred_region
          _
        $region32: #{tpu_custom_call.1} parent=11 // pred_fallthru
          _
        // Predicated region
        $region33: #{tpu_custom_call.1} parent=11 // pred_check
          %p371 = pneg %p305
        $region34: #{tpu_custom_call.1} parent=11 // pred_check_branch
          %373 = sbr.rel (%p371) target = $region36
        $region35: #{tpu_custom_call.1} parent=11 // pred_region
          %s375 = ssub.s32 128, 128
          %376 = vsyncadd [#allocation6], %s375
          %s378 = sshll.u32 [#allocation5], 4
          %s379 = int_to_ptr.vmem [resolvable:$true] %s378
          %381 = dma.hbm_to_vmem [thread:$0]  %s11, 128, %s379, [#allocation6]
        $region36: #{tpu_custom_call.1} parent=11 // pred_fallthru
          _
      $region12: #{tpu_custom_call.1} parent=5 // pred_fallthru
        _
      %p382 = scmp.lt.s32.totalorder %s23, 8
      // Predicated region
      $region37: #{tpu_custom_call.1} parent=5 // pred_check
        %p383 = pneg %p382
      $region38: #{tpu_custom_call.1} parent=5 // pred_check_branch
        %385 = sbr.rel (%p383) target = $region40
      $region39: #{tpu_custom_call.1} parent=5 // pred_region
        // Predicated region
        $region41: #{tpu_custom_call.1} parent=39 // pred_check
          %p386 = pneg %p43
        $region42: #{tpu_custom_call.1} parent=39 // pred_check_branch
          %388 = sbr.rel (%p386) target = $region44
        $region43: #{tpu_custom_call.1} parent=39 // pred_region
          %p389 = scmp.lt.s32.totalorder %s23, 7
          %s390 = scalar_select %p389, %s23, 7
          %s391 = smul.addr %s390, 2
          %s392 = smul.addr %s391, 4
          %s393 = scalar_lea.vmem %s0, %s392
        $region44: #{tpu_custom_call.1} parent=39 // pred_fallthru
          _
        // Predicated region
        $region45: #{tpu_custom_call.1} parent=39 // pred_check
          %p394 = pneg %p69
        $region46: #{tpu_custom_call.1} parent=39 // pred_check_branch
          %396 = sbr.rel (%p394) target = $region48
        $region47: #{tpu_custom_call.1} parent=39 // pred_region
          %p397 = scmp.lt.s32.totalorder %s23, 7
          %s398 = scalar_select %p397, %s23, 7
          %s399 = smul.addr %s398, 2
          %s400 = smul.addr %s399, 4
          %s401 = scalar_lea.vmem %s1, %s400
        $region48: #{tpu_custom_call.1} parent=39 // pred_fallthru
          _
        // Predicated region
        $region49: #{tpu_custom_call.1} parent=39 // pred_check
          %p402 = pneg %p95
        $region50: #{tpu_custom_call.1} parent=39 // pred_check_branch
          %404 = sbr.rel (%p402) target = $region52
        $region51: #{tpu_custom_call.1} parent=39 // pred_region
          %p405 = scmp.lt.s32.totalorder %s23, 7
          %s406 = scalar_select %p405, %s23, 7
          %s407 = smul.addr %s406, 2
          %s408 = smul.addr %s407, 4
          %s409 = scalar_lea.vmem %s2, %s408
        $region52: #{tpu_custom_call.1} parent=39 // pred_fallthru
          _
        // Predicated region
        $region53: #{tpu_custom_call.1} parent=39 // pred_check
          %p410 = pneg %p121
        $region54: #{tpu_custom_call.1} parent=39 // pred_check_branch
          %412 = sbr.rel (%p410) target = $region56
        $region55: #{tpu_custom_call.1} parent=39 // pred_region
          %p413 = scmp.lt.s32.totalorder %s23, 7
          %s414 = scalar_select %p413, %s23, 7
          %s415 = smul.addr %s414, 2
          %s416 = smul.addr %s415, 4
          %s417 = scalar_lea.vmem %s3, %s416
        $region56: #{tpu_custom_call.1} parent=39 // pred_fallthru
          _
        // Predicated region
        $region57: #{tpu_custom_call.1} parent=39 // pred_check
          %p418 = pneg %p147
        $region58: #{tpu_custom_call.1} parent=39 // pred_check_branch
          %420 = sbr.rel (%p418) target = $region60
        $region59: #{tpu_custom_call.1} parent=39 // pred_region
          %p421 = scmp.lt.s32.totalorder %s23, 7
          %s422 = scalar_select %p421, %s23, 7
          %s423 = smul.addr %s422, 2
          %s424 = smul.addr %s423, 4
          %s425 = scalar_lea.vmem %s4, %s424
        $region60: #{tpu_custom_call.1} parent=39 // pred_fallthru
          _
        // Predicated region
        $region61: #{tpu_custom_call.1} parent=39 // pred_check
          %p426 = pneg %p173
        $region62: #{tpu_custom_call.1} parent=39 // pred_check_branch
          %428 = sbr.rel (%p426) target = $region64
        $region63: #{tpu_custom_call.1} parent=39 // pred_region
          %p429 = scmp.lt.s32.totalorder %s23, 7
          %s430 = scalar_select %p429, %s23, 7
          %s431 = smul.addr %s430, 2
          %s432 = smul.addr %s431, 4
          %s433 = scalar_lea.vmem %s5, %s432
        $region64: #{tpu_custom_call.1} parent=39 // pred_fallthru
          _
      $region40: #{tpu_custom_call.1} parent=5 // pred_fallthru
        _
      %p434 = scmp.le.s32.totalorder 1, %s23
      %p435 = scmp.lt.s32.totalorder %s23, 9
      %p436 = pnand %p434, %p435
      %p437 = pneg %p436
      // Predicated region
      $region65: #{tpu_custom_call.1} parent=5 // pred_check
        _
      $region66: #{tpu_custom_call.1} parent=5 // pred_check_branch
        %439 = sbr.rel (%p436) target = $region68
      $region67: #{tpu_custom_call.1} parent=5 // pred_region
        %s440 = ssub.s32 %s23, 1
        // Predicated region
        $region69: #{tpu_custom_call.1} parent=67 // pred_check
          %p441 = pneg %p200
        $region70: #{tpu_custom_call.1} parent=67 // pred_check_branch
          %443 = sbr.rel (%p441) target = $region72
        $region71: #{tpu_custom_call.1} parent=67 // pred_region
          %444 = dma.done [#allocation3], 128
        $region72: #{tpu_custom_call.1} parent=67 // pred_fallthru
          _
        // Predicated region
        $region73: #{tpu_custom_call.1} parent=67 // pred_check
          %p445 = pneg %p305
        $region74: #{tpu_custom_call.1} parent=67 // pred_check_branch
          %447 = sbr.rel (%p445) target = $region76
        $region75: #{tpu_custom_call.1} parent=67 // pred_region
          %448 = dma.done [#allocation6], 128
        $region76: #{tpu_custom_call.1} parent=67 // pred_fallthru
          _
        %p449 = scmp.lt.s32.totalorder %s28, 7
        %s450 = scalar_select %p449, %s28, 7
        %s451 = smul.addr %s450, 2
        %s452 = smul.addr %s451, 4
        %s453 = scalar_lea.vmem %s0, %s452
        %p454 = pneg %p49
        %p455 = pneg %p46
        %p456 = scmp.lt.s32.totalorder %s28, 7
        %s457 = scalar_select %p456, %s28, 7
        %s458 = smul.addr %s457, 2
        %s459 = smul.addr %s458, 4
        %s460 = scalar_lea.vmem %s1, %s459
        %p461 = pneg %p75
        %p462 = pneg %p72
        %p463 = scmp.lt.s32.totalorder %s28, 7
        %s464 = scalar_select %p463, %s28, 7
        %s465 = smul.addr %s464, 2
        %s466 = smul.addr %s465, 4
        %s467 = scalar_lea.vmem %s2, %s466
        %p468 = pneg %p101
        %p469 = pneg %p98
        %p470 = scmp.lt.s32.totalorder %s28, 7
        %s471 = scalar_select %p470, %s28, 7
        %s472 = smul.addr %s471, 2
        %s473 = smul.addr %s472, 4
        %s474 = scalar_lea.vmem %s3, %s473
        %p475 = pneg %p127
        %p476 = pneg %p124
        %p477 = scmp.lt.s32.totalorder %s28, 7
        %s478 = scalar_select %p477, %s28, 7
        %s479 = smul.addr %s478, 2
        %s480 = smul.addr %s479, 4
        %s481 = scalar_lea.vmem %s4, %s480
        %p482 = pneg %p153
        %p483 = pneg %p150
        %p484 = scmp.lt.s32.totalorder %s28, 7
        %s485 = scalar_select %p484, %s28, 7
        %s486 = smul.addr %s485, 2
        %s487 = smul.addr %s486, 4
        %s488 = scalar_lea.vmem %s5, %s487
        %p489 = pneg %p179
        %p490 = pneg %p176
        %p491 = pneg %p200
        %p492 = pneg %p197
        %p493 = pneg %p221
        %p494 = pneg %p218
        %p495 = pneg %p242
        %p496 = pneg %p239
        %p497 = pneg %p263
        %p498 = pneg %p260
        %p499 = pneg %p284
        %p500 = pneg %p281
        %p501 = pneg %p305
        %p502 = pneg %p302
        %p503 = pneg %p331
        %p504 = pneg %p328
        %s505 = sand.u32 %s318, 1
        %s506 = scalar_lea.sflag [#allocation4], %s505
        %s507 = sand.u32 %s318, 1
        %s508 = smul.addr %s507, 16
        %s509 = scalar_lea.vmem [#allocation7], %s508
        %p510 = scmp.lt.s32.totalorder %s28, 7
        %s511 = scalar_select %p510, %s28, 7
        %s512 = smul.addr %s511, 2
        %s513 = smul.addr %s512, 4
        %s514 = scalar_lea.vmem %s0, %s513
        %p515 = scmp.lt.s32.totalorder %s28, 7
        %s516 = scalar_select %p515, %s28, 7
        %s517 = smul.addr %s516, 2
        %s518 = smul.addr %s517, 4
        %s519 = scalar_lea.vmem %s1, %s518
        %p520 = scmp.lt.s32.totalorder %s28, 7
        %s521 = scalar_select %p520, %s28, 7
        %s522 = smul.addr %s521, 2
        %s523 = smul.addr %s522, 4
        %s524 = scalar_lea.vmem %s2, %s523
        %p525 = scmp.lt.s32.totalorder %s28, 7
        %s526 = scalar_select %p525, %s28, 7
        %s527 = smul.addr %s526, 2
        %s528 = smul.addr %s527, 4
        %s529 = scalar_lea.vmem %s3, %s528
        %p530 = scmp.lt.s32.totalorder %s28, 7
        %s531 = scalar_select %p530, %s28, 7
        %s532 = smul.addr %s531, 2
        %s533 = smul.addr %s532, 4
        %s534 = scalar_lea.vmem %s4, %s533
        %p535 = scmp.lt.s32.totalorder %s28, 7
        %s536 = scalar_select %p535, %s28, 7
        %s537 = smul.addr %s536, 2
        %s538 = smul.addr %s537, 4
        %s539 = scalar_lea.vmem %s5, %s538
        %v541 = vld [vmem:[%s524] sm:$0xf]
        %v542 = vld [vmem:[%s524 + $0x4] sm:$0xf]
        %v543 = vld [vmem:[%s514] sm:$0xf]
        %v544 = vld [vmem:[%s514 + $0x4] sm:$0xf]
        %v547 = vunpack.c.l.b16 %v541
        %v548 = vunpack.c.l.b16 %v542
        %v549 = vpack.c.b16 %v548, %v547
        %v552 = vunpack.c.l.b16 %v543
        %v553 = vunpack.c.l.b16 %v544
        %v554 = vpack.c.b16 %v553, %v552
        %vm556 = vcmask 130048
        %v558 = vsel %vm556, %v549, 0
        %560 = vmatprep.subr.bf16.mxu0 0
        %561 = vmatpush1.bf16.msra.mxu0 0
        %562 = vmatprep.subr.bf16.mxu0 0
        %563 = vmatpush1.bf16.msra.mxu0 0
        %564 = vmatprep.subr.bf16.mxu0 0
        %565 = vmatpush1.bf16.msra.mxu0 0
        %566 = vmatprep.subr.bf16.mxu0 0
        %567 = vmatpush1.bf16.msra.mxu0 0
        %568 = vmatprep.subr.bf16.mxu0 0
        %569 = vmatpush1.bf16.msra.mxu0 0
        %570 = vmatprep.subr.bf16.mxu0 0
        %571 = vmatpush1.bf16.msra.mxu0 0
        %572 = vmatprep.subr.bf16.mxu0 0
        %573 = vmatpush1.bf16.msra.mxu0 0
        %574 = vmatprep.subr.bf16.mxu0 0
        %575 = vmatpush1.bf16.msra.mxu0 %v554
        %576 = vmatprep.subr.bf16.mxu0 0
        %577 = vmatpush2.bf16.msra.mxu0 0
        %578 = vmatprep.subr.bf16.mxu0 0
        %579 = vmatpush2.bf16.msra.mxu0 0
        %580 = vmatprep.subr.bf16.mxu0 0
        %581 = vmatpush2.bf16.msra.mxu0 0
        %582 = vmatprep.subr.bf16.mxu0 0
        %583 = vmatpush2.bf16.msra.mxu0 0
        %584 = vmatprep.subr.bf16.mxu0 0
        %585 = vmatpush2.bf16.msra.mxu0 0
        %586 = vmatprep.subr.bf16.mxu0 0
        %587 = vmatpush2.bf16.msra.mxu0 0
        %588 = vmatprep.subr.bf16.mxu0 0
        %589 = vmatpush2.bf16.msra.mxu0 0
        %590 = vmatprep.subr.bf16.mxu0 0
        %591 = vmatpush2.bf16.msra.mxu0 0
        %592 = vmatprep.mubr.bf16.mxu0 0
        %593 = vmatmul.mubr.bf16.gmra.mxu0 %v558
        %v594 = vpop.f32.mrf.mxu0
        %v595 = vadd.f32 0.0, %v594
        %v596 = vpop.f32.mrf.mxu0
        %v597 = vpop.f32.mrf.mxu0
        %v598 = vadd.f32 0.0, %v597
        %v599 = vpop.f32.mrf.mxu0
        %600 = vdwg.mxu0
        %v601 = vpack.c.bf16 %v598, %v595
        %602 = vmatprep.subr.bf16.mxu0 0
        %603 = vmatpush1.bf16.msra.mxu0 0
        %604 = vmatprep.subr.bf16.mxu0 0
        %605 = vmatpush1.bf16.msra.mxu0 0
        %606 = vmatprep.subr.bf16.mxu0 0
        %607 = vmatpush1.bf16.msra.mxu0 0
        %608 = vmatprep.subr.bf16.mxu0 0
        %609 = vmatpush1.bf16.msra.mxu0 0
        %610 = vmatprep.subr.bf16.mxu0 0
        %611 = vmatpush1.bf16.msra.mxu0 0
        %612 = vmatprep.subr.bf16.mxu0 0
        %613 = vmatpush1.bf16.msra.mxu0 0
        %614 = vmatprep.subr.bf16.mxu0 0
        %615 = vmatpush1.bf16.msra.mxu0 0
        %616 = vmatprep.subr.bf16.mxu0 0
        %617 = vmatpush1.bf16.msra.mxu0 %v601
        %618 = vmatprep.subr.bf16.mxu0 0
        %619 = vmatpush2.bf16.msra.mxu0 0
        %620 = vmatprep.subr.bf16.mxu0 0
        %621 = vmatpush2.bf16.msra.mxu0 0
        %622 = vmatprep.subr.bf16.mxu0 0
        %623 = vmatpush2.bf16.msra.mxu0 0
        %624 = vmatprep.subr.bf16.mxu0 0
        %625 = vmatpush2.bf16.msra.mxu0 0
        %626 = vmatprep.subr.bf16.mxu0 0
        %627 = vmatpush2.bf16.msra.mxu0 0
        %628 = vmatprep.subr.bf16.mxu0 0
        %629 = vmatpush2.bf16.msra.mxu0 0
        %630 = vmatprep.subr.bf16.mxu0 0
        %631 = vmatpush2.bf16.msra.mxu0 0
        %632 = vmatprep.subr.bf16.mxu0 0
        %633 = vmatpush2.bf16.msra.mxu0 0
        %634 = vmatprep.mubr.bf16.mxu0 0
        %635 = vmatmul.mubr.bf16.gmra.mxu0 %v558
        %v636 = vpop.f32.mrf.mxu0
        %v637 = vadd.f32 0.0, %v636
        %v638 = vpop.f32.mrf.mxu0
        %v639 = vpop.f32.mrf.mxu0
        %v640 = vadd.f32 0.0, %v639
        %v641 = vpop.f32.mrf.mxu0
        %642 = vdwg.mxu0
        %v643 = vpack.c.bf16 %v640, %v637
        %645 = vrot.lane.b32.xlu0 %v601, 5
        %v646 = vpop.permute.xlu0 %645
        %648 = vrot.lane.b32.xlu0 %v643, 10
        %v649 = vpop.permute.xlu0 %648
        %vm650 = vcmask 39936
        %v653 = vsel %vm650, %v554, %v646
        %vm654 = vcmask 80896
        %v656 = vsel %vm654, %v653, %v649
        %v657 = vld [vmem:[#allocation2] sm:$0xf]
        %v658 = vld [vmem:[#allocation2 + $0x4] sm:$0xf]
        %v659 = vld [vmem:[#allocation5] sm:$0x1]
        %v660 = vlaneseq
        %v661 = vshrl.u32 %v660, 7
        %v662 = vsub.s32 0, %v661
        %v663 = vrot.slane %v659, %v662
        %v666 = vunpack.c.l.b16 %v657
        %v667 = vunpack.c.l.b16 %v658
        %v668 = vpack.c.b16 %v667, %v666
        %vm669 = vcmask 121856
        %v670 = vsel %vm669, %v656, 0
        %vm672 = vcmask 1046528
        %vm673 = vcmask 1047552
        %v674 = vsel %vm672, 4294967295, 65535
        %v675 = vsel %vm673, %v674, 0
        %v677 = vand.u32 %v668, %v675
        %679 = vmatprep.subr.bf16.mxu0 0
        %680 = vmatpush1.bf16.msra.mxu0 0
        %681 = vmatprep.subr.bf16.mxu0 0
        %682 = vmatpush1.bf16.msra.mxu0 0
        %683 = vmatprep.subr.bf16.mxu0 0
        %684 = vmatpush1.bf16.msra.mxu0 0
        %685 = vmatprep.subr.bf16.mxu0 0
        %686 = vmatpush1.bf16.msra.mxu0 0
        %687 = vmatprep.subr.bf16.mxu0 0
        %688 = vmatpush1.bf16.msra.mxu0 0
        %689 = vmatprep.subr.bf16.mxu0 0
        %690 = vmatpush1.bf16.msra.mxu0 0
        %691 = vmatprep.subr.bf16.mxu0 0
        %692 = vmatpush1.bf16.msra.mxu0 0
        %693 = vmatprep.subr.bf16.mxu0 0
        %694 = vmatpush1.bf16.msra.mxu0 %v677
        %695 = vmatprep.subr.bf16.mxu0 0
        %696 = vmatpush2.bf16.msra.mxu0 0
        %697 = vmatprep.subr.bf16.mxu0 0
        %698 = vmatpush2.bf16.msra.mxu0 0
        %699 = vmatprep.subr.bf16.mxu0 0
        %700 = vmatpush2.bf16.msra.mxu0 0
        %701 = vmatprep.subr.bf16.mxu0 0
        %702 = vmatpush2.bf16.msra.mxu0 0
        %703 = vmatprep.subr.bf16.mxu0 0
        %704 = vmatpush2.bf16.msra.mxu0 0
        %705 = vmatprep.subr.bf16.mxu0 0
        %706 = vmatpush2.bf16.msra.mxu0 0
        %707 = vmatprep.subr.bf16.mxu0 0
        %708 = vmatpush2.bf16.msra.mxu0 0
        %709 = vmatprep.subr.bf16.mxu0 0
        %710 = vmatpush2.bf16.msra.mxu0 0
        %711 = vmatprep.mubr.bf16.mxu0 0
        %712 = vmatmul.mubr.bf16.gmra.mxu0 %v670
        %v713 = vpop.f32.mrf.mxu0
        %v714 = vadd.f32 %v663, %v713
        %v715 = vpop.f32.mrf.mxu0
        %v716 = vpop.f32.mrf.mxu0
        %v717 = vadd.f32 %v663, %v716
        %v718 = vpop.f32.mrf.mxu0
        %719 = vdwg.mxu0
        %v720 = vmax.f32 %v714, 0.0
        %v721 = vmax.f32 %v717, 0.0
        %v722 = vpack.c.bf16 %v721, %v720
        %v723 = vld [vmem:[%s529] sm:$0xf]
        %v724 = vld [vmem:[%s529 + $0x4] sm:$0xf]
        %v727 = vunpack.c.l.b16 %v723
        %v728 = vunpack.c.l.b16 %v724
        %v729 = vpack.c.b16 %v728, %v727
        %v731 = vsel %vm556, %v729, 0
        %733 = vmatprep.subr.bf16.mxu0 0
        %734 = vmatpush1.bf16.msra.mxu0 0
        %735 = vmatprep.subr.bf16.mxu0 0
        %736 = vmatpush1.bf16.msra.mxu0 0
        %737 = vmatprep.subr.bf16.mxu0 0
        %738 = vmatpush1.bf16.msra.mxu0 0
        %739 = vmatprep.subr.bf16.mxu0 0
        %740 = vmatpush1.bf16.msra.mxu0 0
        %741 = vmatprep.subr.bf16.mxu0 0
        %742 = vmatpush1.bf16.msra.mxu0 0
        %743 = vmatprep.subr.bf16.mxu0 0
        %744 = vmatpush1.bf16.msra.mxu0 0
        %745 = vmatprep.subr.bf16.mxu0 0
        %746 = vmatpush1.bf16.msra.mxu0 0
        %747 = vmatprep.subr.bf16.mxu0 0
        %748 = vmatpush1.bf16.msra.mxu0 %v722
        %749 = vmatprep.subr.bf16.mxu0 0
        %750 = vmatpush2.bf16.msra.mxu0 0
        %751 = vmatprep.subr.bf16.mxu0 0
        %752 = vmatpush2.bf16.msra.mxu0 0
        %753 = vmatprep.subr.bf16.mxu0 0
        %754 = vmatpush2.bf16.msra.mxu0 0
        %755 = vmatprep.subr.bf16.mxu0 0
        %756 = vmatpush2.bf16.msra.mxu0 0
        %757 = vmatprep.subr.bf16.mxu0 0
        %758 = vmatpush2.bf16.msra.mxu0 0
        %759 = vmatprep.subr.bf16.mxu0 0
        %760 = vmatpush2.bf16.msra.mxu0 0
        %761 = vmatprep.subr.bf16.mxu0 0
        %762 = vmatpush2.bf16.msra.mxu0 0
        %763 = vmatprep.subr.bf16.mxu0 0
        %764 = vmatpush2.bf16.msra.mxu0 0
        %765 = vmatprep.mubr.bf16.mxu0 0
        %766 = vmatmul.mubr.bf16.gmra.mxu0 %v731
        %v767 = vpop.f32.mrf.mxu0
        %v768 = vadd.f32 0.0, %v767
        %v769 = vpop.f32.mrf.mxu0
        %v770 = vpop.f32.mrf.mxu0
        %v771 = vadd.f32 0.0, %v770
        %v772 = vpop.f32.mrf.mxu0
        %773 = vdwg.mxu0
        %v774 = vpack.c.bf16 %v771, %v768
        %v775 = vld [vmem:[%s519] sm:$0xf]
        %v776 = vld [vmem:[%s519 + $0x4] sm:$0xf]
        %v779 = vunpack.c.l.b16 %v775
        %v780 = vunpack.c.l.b16 %v776
        %v781 = vpack.c.b16 %v780, %v779
        %782 = vrot.lane.b32.xlu0 %v781, 32
        %v783 = vpop.permute.xlu0 %782
        %vm784 = vcmask 261120
        %v787 = vsel %vm784, %v774, %v783
        %v788 = vld [vmem:[%s7] sm:$0xf]
        %v789 = vld [vmem:[%s7 + $0x4] sm:$0xf]
        %v790 = vld [vmem:[%s7 + $0x8] sm:$0xf]
        %v791 = vld [vmem:[%s7 + $0xc] sm:$0xf]
        %v792 = vld [vmem:[%s7 + $0x10] sm:$0x7]
        %v793 = vld [vmem:[#allocation5 + $0x1] sm:$0x1]
        %v794 = vlaneseq
        %v795 = vshrl.u32 %v794, 7
        %v796 = vsub.s32 0, %v795
        %v797 = vrot.slane %v793, %v796
        %v803 = vunpack.c.l.b16 %v788
        %v804 = vunpack.c.l.b16 %v789
        %v805 = vunpack.c.l.b16 %v790
        %v806 = vunpack.c.l.b16 %v791
        %v807 = vunpack.c.l.b16 %v792
        %v808 = vpack.c.b16 %v804, %v803
        %v809 = vpack.c.b16 %v806, %v805
        %v810 = vpack.c.b16 %v807, %v807
        %vm813 = vcmask 310272
        %v814 = vsel %vm813, %v787, 0
        %vm816 = vcmask 1042432
        %v818 = vsel %vm816, %v810, 0
        %820 = vmatprep.subr.bf16.mxu0 0
        %821 = vmatpush1.bf16.msra.mxu0 0
        %822 = vmatprep.subr.bf16.mxu0 0
        %823 = vmatpush1.bf16.msra.mxu0 0
        %824 = vmatprep.subr.bf16.mxu0 0
        %825 = vmatpush1.bf16.msra.mxu0 0
        %826 = vmatprep.subr.bf16.mxu0 0
        %827 = vmatpush1.bf16.msra.mxu0 0
        %828 = vmatprep.subr.bf16.mxu0 0
        %829 = vmatpush1.bf16.msra.mxu0 0
        %830 = vmatprep.subr.bf16.mxu0 0
        %831 = vmatpush1.bf16.msra.mxu0 %v818
        %832 = vmatprep.subr.bf16.mxu0 0
        %833 = vmatpush1.bf16.msra.mxu0 %v809
        %834 = vmatprep.subr.bf16.mxu0 0
        %835 = vmatpush1.bf16.msra.mxu0 %v808
        %836 = vmatprep.subr.bf16.mxu0 0
        %837 = vmatpush2.bf16.msra.mxu0 0
        %838 = vmatprep.subr.bf16.mxu0 0
        %839 = vmatpush2.bf16.msra.mxu0 0
        %840 = vmatprep.subr.bf16.mxu0 0
        %841 = vmatpush2.bf16.msra.mxu0 0
        %842 = vmatprep.subr.bf16.mxu0 0
        %843 = vmatpush2.bf16.msra.mxu0 0
        %844 = vmatprep.subr.bf16.mxu0 0
        %845 = vmatpush2.bf16.msra.mxu0 0
        %846 = vmatprep.subr.bf16.mxu0 0
        %847 = vmatpush2.bf16.msra.mxu0 0
        %848 = vmatprep.subr.bf16.mxu0 0
        %849 = vmatpush2.bf16.msra.mxu0 0
        %850 = vmatprep.subr.bf16.mxu0 0
        %851 = vmatpush2.bf16.msra.mxu0 0
        %852 = vmatprep.mubr.bf16.mxu0 0
        %853 = vmatmul.mubr.bf16.gmra.mxu0 %v814
        %v854 = vpop.f32.mrf.mxu0
        %v855 = vadd.f32 %v797, %v854
        %v856 = vpop.f32.mrf.mxu0
        %v857 = vpop.f32.mrf.mxu0
        %v858 = vadd.f32 %v797, %v857
        %v859 = vpop.f32.mrf.mxu0
        %860 = vdwg.mxu0
        %v861 = vmax.f32 %v855, 0.0
        %v862 = vmax.f32 %v858, 0.0
        %v863 = vpack.c.bf16 %v862, %v861
        %v864 = vld [vmem:[%s534] sm:$0xf]
        %v865 = vld [vmem:[%s534 + $0x4] sm:$0xf]
        %v868 = vunpack.c.l.b16 %v864
        %v869 = vunpack.c.l.b16 %v865
        %v870 = vpack.c.b16 %v869, %v868
        %v872 = vsel %vm556, %v870, 0
        %874 = vmatprep.subr.bf16.mxu0 0
        %875 = vmatpush1.bf16.msra.mxu0 0
        %876 = vmatprep.subr.bf16.mxu0 0
        %877 = vmatpush1.bf16.msra.mxu0 0
        %878 = vmatprep.subr.bf16.mxu0 0
        %879 = vmatpush1.bf16.msra.mxu0 0
        %880 = vmatprep.subr.bf16.mxu0 0
        %881 = vmatpush1.bf16.msra.mxu0 0
        %882 = vmatprep.subr.bf16.mxu0 0
        %883 = vmatpush1.bf16.msra.mxu0 0
        %884 = vmatprep.subr.bf16.mxu0 0
        %885 = vmatpush1.bf16.msra.mxu0 0
        %886 = vmatprep.subr.bf16.mxu0 0
        %887 = vmatpush1.bf16.msra.mxu0 0
        %888 = vmatprep.subr.bf16.mxu0 0
        %889 = vmatpush1.bf16.msra.mxu0 %v722
        %890 = vmatprep.subr.bf16.mxu0 0
        %891 = vmatpush2.bf16.msra.mxu0 0
        %892 = vmatprep.subr.bf16.mxu0 0
        %893 = vmatpush2.bf16.msra.mxu0 0
        %894 = vmatprep.subr.bf16.mxu0 0
        %895 = vmatpush2.bf16.msra.mxu0 0
        %896 = vmatprep.subr.bf16.mxu0 0
        %897 = vmatpush2.bf16.msra.mxu0 0
        %898 = vmatprep.subr.bf16.mxu0 0
        %899 = vmatpush2.bf16.msra.mxu0 0
        %900 = vmatprep.subr.bf16.mxu0 0
        %901 = vmatpush2.bf16.msra.mxu0 0
        %902 = vmatprep.subr.bf16.mxu0 0
        %903 = vmatpush2.bf16.msra.mxu0 0
        %904 = vmatprep.subr.bf16.mxu0 0
        %905 = vmatpush2.bf16.msra.mxu0 0
        %906 = vmatprep.mubr.bf16.mxu0 0
        %907 = vmatmul.mubr.bf16.gmra.mxu0 %v872
        %v908 = vpop.f32.mrf.mxu0
        %v909 = vadd.f32 0.0, %v908
        %v910 = vpop.f32.mrf.mxu0
        %v911 = vpop.f32.mrf.mxu0
        %v912 = vadd.f32 0.0, %v911
        %v913 = vpop.f32.mrf.mxu0
        %914 = vdwg.mxu0
        %v915 = vpack.c.bf16 %v912, %v909
        %917 = vrot.lane.b32.xlu0 %v863, 32
        %v918 = vpop.permute.xlu0 %917
        %v921 = vsel %vm784, %v915, %v918
        %v922 = vld [vmem:[%s8] sm:$0xf]
        %v923 = vld [vmem:[%s8 + $0x4] sm:$0xf]
        %v924 = vld [vmem:[%s8 + $0x8] sm:$0xf]
        %v925 = vld [vmem:[%s8 + $0xc] sm:$0xf]
        %v926 = vld [vmem:[%s8 + $0x10] sm:$0xf]
        %v927 = vld [vmem:[%s8 + $0x14] sm:$0xf]
        %v928 = vld [vmem:[%s8 + $0x18] sm:$0xf]
        %v929 = vld [vmem:[%s8 + $0x1c] sm:$0xf]
        %v930 = vld [vmem:[#allocation5 + $0x2] sm:$0x1]
        %v931 = vlaneseq
        %v932 = vshrl.u32 %v931, 7
        %v933 = vsub.s32 0, %v932
        %v934 = vrot.slane %v930, %v933
        %v943 = vunpack.c.l.b16 %v922
        %v944 = vunpack.c.l.b16 %v923
        %v945 = vunpack.c.l.b16 %v924
        %v946 = vunpack.c.l.b16 %v925
        %v947 = vunpack.c.l.b16 %v926
        %v948 = vunpack.c.l.b16 %v927
        %v949 = vunpack.c.l.b16 %v928
        %v950 = vunpack.c.l.b16 %v929
        %v951 = vpack.c.b16 %v944, %v943
        %v952 = vpack.c.b16 %v946, %v945
        %v953 = vpack.c.b16 %v948, %v947
        %v954 = vpack.c.b16 %v950, %v949
        %vm959 = vcmask 523264
        %v960 = vsel %vm959, %v921, 0
        %962 = vmatprep.subr.bf16.mxu0 0
        %963 = vmatpush1.bf16.msra.mxu0 0
        %964 = vmatprep.subr.bf16.mxu0 0
        %965 = vmatpush1.bf16.msra.mxu0 0
        %966 = vmatprep.subr.bf16.mxu0 0
        %967 = vmatpush1.bf16.msra.mxu0 0
        %968 = vmatprep.subr.bf16.mxu0 0
        %969 = vmatpush1.bf16.msra.mxu0 0
        %970 = vmatprep.subr.bf16.mxu0 0
        %971 = vmatpush1.bf16.msra.mxu0 %v954
        %972 = vmatprep.subr.bf16.mxu0 0
        %973 = vmatpush1.bf16.msra.mxu0 %v953
        %974 = vmatprep.subr.bf16.mxu0 0
        %975 = vmatpush1.bf16.msra.mxu0 %v952
        %976 = vmatprep.subr.bf16.mxu0 0
        %977 = vmatpush1.bf16.msra.mxu0 %v951
        %978 = vmatprep.subr.bf16.mxu0 0
        %979 = vmatpush2.bf16.msra.mxu0 0
        %980 = vmatprep.subr.bf16.mxu0 0
        %981 = vmatpush2.bf16.msra.mxu0 0
        %982 = vmatprep.subr.bf16.mxu0 0
        %983 = vmatpush2.bf16.msra.mxu0 0
        %984 = vmatprep.subr.bf16.mxu0 0
        %985 = vmatpush2.bf16.msra.mxu0 0
        %986 = vmatprep.subr.bf16.mxu0 0
        %987 = vmatpush2.bf16.msra.mxu0 0
        %988 = vmatprep.subr.bf16.mxu0 0
        %989 = vmatpush2.bf16.msra.mxu0 0
        %990 = vmatprep.subr.bf16.mxu0 0
        %991 = vmatpush2.bf16.msra.mxu0 0
        %992 = vmatprep.subr.bf16.mxu0 0
        %993 = vmatpush2.bf16.msra.mxu0 0
        %994 = vmatprep.mubr.bf16.mxu0 0
        %995 = vmatmul.mubr.bf16.gmra.mxu0 %v960
        %v996 = vpop.f32.mrf.mxu0
        %v997 = vadd.f32 %v934, %v996
        %v998 = vpop.f32.mrf.mxu0
        %v999 = vpop.f32.mrf.mxu0
        %v1000 = vadd.f32 %v934, %v999
        %v1001 = vpop.f32.mrf.mxu0
        %1002 = vdwg.mxu0
        %v1003 = vmax.f32 %v997, 0.0
        %v1004 = vmax.f32 %v1000, 0.0
        %v1005 = vpack.c.bf16 %v1004, %v1003
        %v1006 = vld [vmem:[%s539] sm:$0xf]
        %v1007 = vld [vmem:[%s539 + $0x4] sm:$0xf]
        %v1010 = vunpack.c.l.b16 %v1006
        %v1011 = vunpack.c.l.b16 %v1007
        %v1012 = vpack.c.b16 %v1011, %v1010
        %v1014 = vsel %vm556, %v1012, 0
        %1016 = vmatprep.subr.bf16.mxu0 0
        %1017 = vmatpush1.bf16.msra.mxu0 0
        %1018 = vmatprep.subr.bf16.mxu0 0
        %1019 = vmatpush1.bf16.msra.mxu0 0
        %1020 = vmatprep.subr.bf16.mxu0 0
        %1021 = vmatpush1.bf16.msra.mxu0 0
        %1022 = vmatprep.subr.bf16.mxu0 0
        %1023 = vmatpush1.bf16.msra.mxu0 0
        %1024 = vmatprep.subr.bf16.mxu0 0
        %1025 = vmatpush1.bf16.msra.mxu0 0
        %1026 = vmatprep.subr.bf16.mxu0 0
        %1027 = vmatpush1.bf16.msra.mxu0 0
        %1028 = vmatprep.subr.bf16.mxu0 0
        %1029 = vmatpush1.bf16.msra.mxu0 0
        %1030 = vmatprep.subr.bf16.mxu0 0
        %1031 = vmatpush1.bf16.msra.mxu0 %v1005
        %1032 = vmatprep.subr.bf16.mxu0 0
        %1033 = vmatpush2.bf16.msra.mxu0 0
        %1034 = vmatprep.subr.bf16.mxu0 0
        %1035 = vmatpush2.bf16.msra.mxu0 0
        %1036 = vmatprep.subr.bf16.mxu0 0
        %1037 = vmatpush2.bf16.msra.mxu0 0
        %1038 = vmatprep.subr.bf16.mxu0 0
        %1039 = vmatpush2.bf16.msra.mxu0 0
        %1040 = vmatprep.subr.bf16.mxu0 0
        %1041 = vmatpush2.bf16.msra.mxu0 0
        %1042 = vmatprep.subr.bf16.mxu0 0
        %1043 = vmatpush2.bf16.msra.mxu0 0
        %1044 = vmatprep.subr.bf16.mxu0 0
        %1045 = vmatpush2.bf16.msra.mxu0 0
        %1046 = vmatprep.subr.bf16.mxu0 0
        %1047 = vmatpush2.bf16.msra.mxu0 0
        %1048 = vmatprep.mubr.bf16.mxu0 0
        %1049 = vmatmul.mubr.bf16.gmra.mxu0 %v1014
        %v1050 = vpop.f32.mrf.mxu0
        %v1051 = vadd.f32 0.0, %v1050
        %v1052 = vpop.f32.mrf.mxu0
        %v1053 = vpop.f32.mrf.mxu0
        %v1054 = vadd.f32 0.0, %v1053
        %v1055 = vpop.f32.mrf.mxu0
        %1056 = vdwg.mxu0
        %v1057 = vpack.c.bf16 %v1054, %v1051
        %1058 = vmatprep.subr.bf16.mxu0 0
        %1059 = vmatpush1.bf16.msra.mxu0 0
        %1060 = vmatprep.subr.bf16.mxu0 0
        %1061 = vmatpush1.bf16.msra.mxu0 0
        %1062 = vmatprep.subr.bf16.mxu0 0
        %1063 = vmatpush1.bf16.msra.mxu0 0
        %1064 = vmatprep.subr.bf16.mxu0 0
        %1065 = vmatpush1.bf16.msra.mxu0 0
        %1066 = vmatprep.subr.bf16.mxu0 0
        %1067 = vmatpush1.bf16.msra.mxu0 0
        %1068 = vmatprep.subr.bf16.mxu0 0
        %1069 = vmatpush1.bf16.msra.mxu0 0
        %1070 = vmatprep.subr.bf16.mxu0 0
        %1071 = vmatpush1.bf16.msra.mxu0 0
        %1072 = vmatprep.subr.bf16.mxu0 0
        %1073 = vmatpush1.bf16.msra.mxu0 %v1057
        %1074 = vmatprep.subr.bf16.mxu0 0
        %1075 = vmatpush2.bf16.msra.mxu0 0
        %1076 = vmatprep.subr.bf16.mxu0 0
        %1077 = vmatpush2.bf16.msra.mxu0 0
        %1078 = vmatprep.subr.bf16.mxu0 0
        %1079 = vmatpush2.bf16.msra.mxu0 0
        %1080 = vmatprep.subr.bf16.mxu0 0
        %1081 = vmatpush2.bf16.msra.mxu0 0
        %1082 = vmatprep.subr.bf16.mxu0 0
        %1083 = vmatpush2.bf16.msra.mxu0 0
        %1084 = vmatprep.subr.bf16.mxu0 0
        %1085 = vmatpush2.bf16.msra.mxu0 0
        %1086 = vmatprep.subr.bf16.mxu0 0
        %1087 = vmatpush2.bf16.msra.mxu0 0
        %1088 = vmatprep.subr.bf16.mxu0 0
        %1089 = vmatpush2.bf16.msra.mxu0 0
        %1090 = vmatprep.mubr.bf16.mxu0 0
        %1091 = vmatmul.mubr.bf16.gmra.mxu0 %v1014
        %v1092 = vpop.f32.mrf.mxu0
        %v1093 = vadd.f32 0.0, %v1092
        %v1094 = vpop.f32.mrf.mxu0
        %v1095 = vpop.f32.mrf.mxu0
        %v1096 = vadd.f32 0.0, %v1095
        %v1097 = vpop.f32.mrf.mxu0
        %1098 = vdwg.mxu0
        %v1099 = vpack.c.bf16 %v1096, %v1093
        %1100 = vmatprep.subr.bf16.mxu0 0
        %1101 = vmatpush1.bf16.msra.mxu0 0
        %1102 = vmatprep.subr.bf16.mxu0 0
        %1103 = vmatpush1.bf16.msra.mxu0 0
        %1104 = vmatprep.subr.bf16.mxu0 0
        %1105 = vmatpush1.bf16.msra.mxu0 0
        %1106 = vmatprep.subr.bf16.mxu0 0
        %1107 = vmatpush1.bf16.msra.mxu0 0
        %1108 = vmatprep.subr.bf16.mxu0 0
        %1109 = vmatpush1.bf16.msra.mxu0 0
        %1110 = vmatprep.subr.bf16.mxu0 0
        %1111 = vmatpush1.bf16.msra.mxu0 0
        %1112 = vmatprep.subr.bf16.mxu0 0
        %1113 = vmatpush1.bf16.msra.mxu0 0
        %1114 = vmatprep.subr.bf16.mxu0 0
        %1115 = vmatpush1.bf16.msra.mxu0 %v1099
        %1116 = vmatprep.subr.bf16.mxu0 0
        %1117 = vmatpush2.bf16.msra.mxu0 0
        %1118 = vmatprep.subr.bf16.mxu0 0
        %1119 = vmatpush2.bf16.msra.mxu0 0
        %1120 = vmatprep.subr.bf16.mxu0 0
        %1121 = vmatpush2.bf16.msra.mxu0 0
        %1122 = vmatprep.subr.bf16.mxu0 0
        %1123 = vmatpush2.bf16.msra.mxu0 0
        %1124 = vmatprep.subr.bf16.mxu0 0
        %1125 = vmatpush2.bf16.msra.mxu0 0
        %1126 = vmatprep.subr.bf16.mxu0 0
        %1127 = vmatpush2.bf16.msra.mxu0 0
        %1128 = vmatprep.subr.bf16.mxu0 0
        %1129 = vmatpush2.bf16.msra.mxu0 0
        %1130 = vmatprep.subr.bf16.mxu0 0
        %1131 = vmatpush2.bf16.msra.mxu0 0
        %1132 = vmatprep.mubr.bf16.mxu0 0
        %1133 = vmatmul.mubr.bf16.gmra.mxu0 %v1014
        %v1134 = vpop.f32.mrf.mxu0
        %v1135 = vadd.f32 0.0, %v1134
        %v1136 = vpop.f32.mrf.mxu0
        %v1137 = vpop.f32.mrf.mxu0
        %v1138 = vadd.f32 0.0, %v1137
        %v1139 = vpop.f32.mrf.mxu0
        %1140 = vdwg.mxu0
        %v1141 = vpack.c.bf16 %v1138, %v1135
        %1143 = vrot.lane.b32.xlu0 %v1057, 32
        %v1144 = vpop.permute.xlu0 %1143
        %1146 = vrot.lane.b32.xlu0 %v1099, 64
        %v1147 = vpop.permute.xlu0 %1146
        %1149 = vrot.lane.b32.xlu0 %v1141, 96
        %v1150 = vpop.permute.xlu0 %1149
        %v1153 = vsel %vm784, %v1005, %v1144
        %v1155 = vsel %vm959, %v1153, %v1147
        %vm1156 = vcmask 785408
        %v1158 = vsel %vm1156, %v1155, %v1150
        %v1160 = vld [vmem:[%s9] sm:$0xf]
        %v1161 = vld [vmem:[%s9 + $0x4] sm:$0xf]
        %v1162 = vld [vmem:[%s9 + $0x8] sm:$0xf]
        %v1163 = vld [vmem:[%s9 + $0xc] sm:$0xf]
        %v1164 = vld [vmem:[%s9 + $0x10] sm:$0xf]
        %v1165 = vld [vmem:[%s9 + $0x14] sm:$0xf]
        %v1166 = vld [vmem:[%s9 + $0x18] sm:$0xf]
        %v1167 = vld [vmem:[%s9 + $0x1c] sm:$0xf]
        %v1168 = vld [vmem:[%s9 + $0x20] sm:$0xf]
        %v1169 = vld [vmem:[%s9 + $0x24] sm:$0xf]
        %v1170 = vld [vmem:[%s9 + $0x28] sm:$0xf]
        %v1171 = vld [vmem:[%s9 + $0x2c] sm:$0xf]
        %v1172 = vld [vmem:[%s9 + $0x30] sm:$0xf]
        %v1173 = vld [vmem:[%s9 + $0x34] sm:$0xf]
        %v1174 = vld [vmem:[%s9 + $0x38] sm:$0xf]
        %v1175 = vld [vmem:[%s9 + $0x3c] sm:$0xf]
        %v1176 = vld [vmem:[#allocation5 + $0x3] sm:$0x1]
        %v1177 = vlaneseq
        %v1178 = vshrl.u32 %v1177, 7
        %v1179 = vsub.s32 0, %v1178
        %v1180 = vrot.slane %v1176, %v1179
        %v1197 = vunpack.c.l.b16 %v1160
        %v1198 = vunpack.c.l.b16 %v1161
        %v1199 = vunpack.c.l.b16 %v1162
        %v1200 = vunpack.c.l.b16 %v1163
        %v1201 = vunpack.c.l.b16 %v1164
        %v1202 = vunpack.c.l.b16 %v1165
        %v1203 = vunpack.c.l.b16 %v1166
        %v1204 = vunpack.c.l.b16 %v1167
        %v1205 = vunpack.c.l.b16 %v1168
        %v1206 = vunpack.c.l.b16 %v1169
        %v1207 = vunpack.c.l.b16 %v1170
        %v1208 = vunpack.c.l.b16 %v1171
        %v1209 = vunpack.c.l.b16 %v1172
        %v1210 = vunpack.c.l.b16 %v1173
        %v1211 = vunpack.c.l.b16 %v1174
        %v1212 = vunpack.c.l.b16 %v1175
        %v1213 = vpack.c.b16 %v1198, %v1197
        %v1214 = vpack.c.b16 %v1200, %v1199
        %v1215 = vpack.c.b16 %v1202, %v1201
        %v1216 = vpack.c.b16 %v1204, %v1203
        %v1217 = vpack.c.b16 %v1206, %v1205
        %v1218 = vpack.c.b16 %v1208, %v1207
        %v1219 = vpack.c.b16 %v1210, %v1209
        %v1220 = vpack.c.b16 %v1212, %v1211
        %1229 = vmatprep.subr.bf16.mxu0 0
        %1230 = vmatpush1.bf16.msra.mxu0 %v1220
        %1231 = vmatprep.subr.bf16.mxu0 0
        %1232 = vmatpush1.bf16.msra.mxu0 %v1219
        %1233 = vmatprep.subr.bf16.mxu0 0
        %1234 = vmatpush1.bf16.msra.mxu0 %v1218
        %1235 = vmatprep.subr.bf16.mxu0 0
        %1236 = vmatpush1.bf16.msra.mxu0 %v1217
        %1237 = vmatprep.subr.bf16.mxu0 0
        %1238 = vmatpush1.bf16.msra.mxu0 %v1216
        %1239 = vmatprep.subr.bf16.mxu0 0
        %1240 = vmatpush1.bf16.msra.mxu0 %v1215
        %1241 = vmatprep.subr.bf16.mxu0 0
        %1242 = vmatpush1.bf16.msra.mxu0 %v1214
        %1243 = vmatprep.subr.bf16.mxu0 0
        %1244 = vmatpush1.bf16.msra.mxu0 %v1213
        %1245 = vmatprep.subr.bf16.mxu0 0
        %1246 = vmatpush2.bf16.msra.mxu0 0
        %1247 = vmatprep.subr.bf16.mxu0 0
        %1248 = vmatpush2.bf16.msra.mxu0 0
        %1249 = vmatprep.subr.bf16.mxu0 0
        %1250 = vmatpush2.bf16.msra.mxu0 0
        %1251 = vmatprep.subr.bf16.mxu0 0
        %1252 = vmatpush2.bf16.msra.mxu0 0
        %1253 = vmatprep.subr.bf16.mxu0 0
        %1254 = vmatpush2.bf16.msra.mxu0 0
        %1255 = vmatprep.subr.bf16.mxu0 0
        %1256 = vmatpush2.bf16.msra.mxu0 0
        %1257 = vmatprep.subr.bf16.mxu0 0
        %1258 = vmatpush2.bf16.msra.mxu0 0
        %1259 = vmatprep.subr.bf16.mxu0 0
        %1260 = vmatpush2.bf16.msra.mxu0 0
        %1261 = vmatprep.mubr.bf16.mxu0 0
        %1262 = vmatmul.mubr.bf16.gmra.mxu0 %v1158
        %v1263 = vpop.f32.mrf.mxu0
        %v1264 = vadd.f32 %v1180, %v1263
        %v1265 = vpop.f32.mrf.mxu0
        %v1266 = vpop.f32.mrf.mxu0
        %v1267 = vadd.f32 %v1180, %v1266
        %v1268 = vpop.f32.mrf.mxu0
        %1269 = vdwg.mxu0
        %v1270 = vmax.f32 %v1264, 0.0
        %v1271 = vmax.f32 %v1267, 0.0
        %v1272 = vpack.c.bf16 %v1271, %v1270
        %v1273 = vld [vmem:[%s10] sm:$0xf]
        %v1274 = vld [vmem:[%s10 + $0x4] sm:$0xf]
        %v1275 = vld [vmem:[%s10 + $0x8] sm:$0xf]
        %v1276 = vld [vmem:[%s10 + $0xc] sm:$0xf]
        %v1277 = vld [vmem:[#allocation5 + $0x4] sm:$0x1]
        %v1278 = vlaneseq
        %v1279 = vshrl.u32 %v1278, 7
        %v1280 = vsub.s32 0, %v1279
        %v1281 = vrot.slane %v1277, %v1280
        %v1286 = vunpack.c.l.b16 %v1273
        %v1287 = vunpack.c.l.b16 %v1274
        %v1288 = vunpack.c.l.b16 %v1275
        %v1289 = vunpack.c.l.b16 %v1276
        %v1290 = vpack.c.b16 %v1287, %v1286
        %v1291 = vpack.c.b16 %v1289, %v1288
        %v1295 = vsel %vm784, %v1272, 0
        %1297 = vmatprep.subr.bf16.mxu0 0
        %1298 = vmatpush1.bf16.msra.mxu0 0
        %1299 = vmatprep.subr.bf16.mxu0 0
        %1300 = vmatpush1.bf16.msra.mxu0 0
        %1301 = vmatprep.subr.bf16.mxu0 0
        %1302 = vmatpush1.bf16.msra.mxu0 0
        %1303 = vmatprep.subr.bf16.mxu0 0
        %1304 = vmatpush1.bf16.msra.mxu0 0
        %1305 = vmatprep.subr.bf16.mxu0 0
        %1306 = vmatpush1.bf16.msra.mxu0 0
        %1307 = vmatprep.subr.bf16.mxu0 0
        %1308 = vmatpush1.bf16.msra.mxu0 0
        %1309 = vmatprep.subr.bf16.mxu0 0
        %1310 = vmatpush1.bf16.msra.mxu0 %v1291
        %1311 = vmatprep.subr.bf16.mxu0 0
        %1312 = vmatpush1.bf16.msra.mxu0 %v1290
        %1313 = vmatprep.subr.bf16.mxu0 0
        %1314 = vmatpush2.bf16.msra.mxu0 0
        %1315 = vmatprep.subr.bf16.mxu0 0
        %1316 = vmatpush2.bf16.msra.mxu0 0
        %1317 = vmatprep.subr.bf16.mxu0 0
        %1318 = vmatpush2.bf16.msra.mxu0 0
        %1319 = vmatprep.subr.bf16.mxu0 0
        %1320 = vmatpush2.bf16.msra.mxu0 0
        %1321 = vmatprep.subr.bf16.mxu0 0
        %1322 = vmatpush2.bf16.msra.mxu0 0
        %1323 = vmatprep.subr.bf16.mxu0 0
        %1324 = vmatpush2.bf16.msra.mxu0 0
        %1325 = vmatprep.subr.bf16.mxu0 0
        %1326 = vmatpush2.bf16.msra.mxu0 0
        %1327 = vmatprep.subr.bf16.mxu0 0
        %1328 = vmatpush2.bf16.msra.mxu0 0
        %1329 = vmatprep.mubr.bf16.mxu0 0
        %1330 = vmatmul.mubr.bf16.gmra.mxu0 %v1295
        %v1331 = vpop.f32.mrf.mxu0
        %v1332 = vadd.f32 %v1281, %v1331
        %v1333 = vpop.f32.mrf.mxu0
        %v1334 = vpop.f32.mrf.mxu0
        %v1335 = vadd.f32 %v1281, %v1334
        %v1336 = vpop.f32.mrf.mxu0
        %1337 = vdwg.mxu0
        %1338 = vst [vmem:[%s509] sm:$0xff] %v1332
        %1339 = vst [vmem:[%s509 + $0x8] sm:$0xff] %v1335
        %s1340 = sand.u32 %s318, 1
        %s1341 = scalar_lea.sflag [#allocation4], %s1340
        %s1342 = sand.u32 %s318, 1
        %s1343 = smul.addr %s1342, 16
        %s1344 = scalar_lea.vmem [#allocation7], %s1343
        // Predicated region
        $region77: #{tpu_custom_call.1} parent=67 // pred_check
          %p1345 = pneg %p328
        $region78: #{tpu_custom_call.1} parent=67 // pred_check_branch
          %1347 = sbr.rel (%p1345) target = $region80
        $region79: #{tpu_custom_call.1} parent=67 // pred_region
          %s1349 = ssub.s32 256, 256
          %1350 = vsyncadd %s1341, %s1349
          %s1351 = smul.addr %s28, 2
          %s1352 = smul.addr %s1351, 128
          %s1353 = scalar_lea.hbm %s12, %s1352
          %s1354 = sshll.u32 %s1344, 4
          %s1355 = int_to_ptr.vmem [resolvable:$true] %s1354
          %1360 = dma.vmem_to_hbm [thread:$0]  %s1355, 256, %s1353, %s1341, 128, 128, 8
        $region80: #{tpu_custom_call.1} parent=67 // pred_fallthru
          _
      $region68: #{tpu_custom_call.1} parent=5 // pred_fallthru
        _
      %p1361 = scmp.le.s32.totalorder 2, %s23
      // Predicated region
      $region81: #{tpu_custom_call.1} parent=5 // pred_check
        %p1362 = pneg %p1361
      $region82: #{tpu_custom_call.1} parent=5 // pred_check_branch
        %1364 = sbr.rel (%p1362) target = $region84
      $region83: #{tpu_custom_call.1} parent=5 // pred_region
        %s1365 = ssub.s32 %s23, 2
        // Predicated region
        $region85: #{tpu_custom_call.1} parent=83 // pred_check
          %p1366 = pneg %p334
        $region86: #{tpu_custom_call.1} parent=83 // pred_check_branch
          %1368 = sbr.rel (%p1366) target = $region88
        $region87: #{tpu_custom_call.1} parent=83 // pred_region
          %s1369 = sand.u32 %s319, 1
          %s1370 = scalar_lea.sflag [#allocation4], %s1369
          %s1371 = sand.u32 %s319, 1
          %s1372 = smul.addr %s1371, 16
          %s1373 = scalar_lea.vmem [#allocation7], %s1372
          %1374 = dma.done %s1370, 256
        $region88: #{tpu_custom_call.1} parent=83 // pred_fallthru
          _
      $region84: #{tpu_custom_call.1} parent=5 // pred_fallthru
        _
    $region6: #{tpu_custom_call.1} parent=1 // loop_footer
      %s27 = sadd.s32 1, %s23
    $region7: #{tpu_custom_call.1} parent=1 // loop_footer_branch
      %22 = sbr.rel target = $region3
    $region8: #{tpu_custom_call.1} parent=1 // loop_exit
      _
    %1375 = vsyncpa [#allocation3], 1
    %s1376 = scalar_lea.sflag [#allocation3], 1
    %1377 = vsyncpa %s1376, 1
    %1378 = vsyncpa [#allocation6], 1
    %1379 = vsyncpa [#allocation4], 1
    %s1380 = scalar_lea.sflag [#allocation4], 1
    %1381 = vsyncpa %s1380, 1

</llo_original>
